<compile_context>
chip_gen: v6e
topology: v6e:2x2x1
jax: 0.10.0
libtpu: 0.0.40
codegen_flags: <defaults>
</compile_context>

<pallas_src>
import math
from collections import namedtuple

import jax
import jax.numpy as jnp
from jax import lax
from jax.experimental import pallas as pl
from jax.experimental.pallas import tpu as pltpu


# ----------------------------------------------------------------------------
# Generation-aware VMEM budgets
# ----------------------------------------------------------------------------
def _vmem_capacity_bytes():
    default = 64 * 1024 * 1024                 # conservative: v7x has 64 MiB/TC
    try:
        fn = getattr(pltpu, "get_tpu_info", None)
        if fn is None:
            return default
        cap = getattr(fn(), "vmem_capacity_bytes", None)
        return int(cap) if cap else default
    except Exception:
        return default


_VMEM_CAP = _vmem_capacity_bytes()
if _VMEM_CAP >= 100 * 1024 * 1024:             # v5e / v6e: 128 MiB per TC
    _VMEM_LIMIT_BYTES = 96 * 1024 * 1024
    _TILE_BUDGET_BYTES = 40 * 1024 * 1024
else:                                          # v7x (or unknown): 64 MiB per TC
    _VMEM_LIMIT_BYTES = 48 * 1024 * 1024
    _TILE_BUDGET_BYTES = 20 * 1024 * 1024


def _compiler_params(n_grid_axes):
    return pltpu.CompilerParams(
        dimension_semantics=("parallel",) * n_grid_axes,
        vmem_limit_bytes=_VMEM_LIMIT_BYTES,
    )


def _ceil_to(v, m):
    return ((v + m - 1) // m) * m


# ----------------------------------------------------------------------------
# conv3x3 + bias + ReLU kernel
# ----------------------------------------------------------------------------
def _conv3x3_relu_kernel(x_ref, top_ref, bot_ref, w_ref, b_ref, o_ref):
    # x_ref  : (NB, TH, W, Cin)   bf16  centre row-band(s)
    # top_ref: (NB, 1,  W, Cin)   bf16  row above each band (masked at r == 0)
    # bot_ref: (NB, 1,  W, Cin)   bf16  row below each band (masked at r == last)
    # w_ref  : (3, 3*Cin, Cout)   bf16  w_ref[kx][ky*Cin + c, :] == w[ky, kx, c, :]
    # b_ref  : (1, Cout)          f32
    # o_ref  : (NB, TH, W, Cout)  bf16
    nb, th, w, cin = x_ref.shape
    cout = o_ref.shape[3]
    m = nb * th * w

    r = pl.program_id(1)
    nbands = pl.num_programs(1)

    x = x_ref[...]
    top = top_ref[...] * (r > 0).astype(x.dtype)
    bot = bot_ref[...] * (r < nbands - 1).astype(x.dtype)

    # ky folded into K: channel-concat of the y-1 / y / y+1 slabs  (K = 3*Cin).
    if th > 1:
        slab0 = jnp.concatenate([top, x[:, :th - 1]], axis=1)   # reads y-1
        slab2 = jnp.concatenate([x[:, 1:], bot], axis=1)        # reads y+1
    else:
        slab0, slab2 = top, bot
    band = jnp.concatenate([slab0, x, slab2], axis=-1).reshape(m, 3 * cin)

    # kx handled with bf16 operand-side column shifts on flattened rows.  The
    # wrap across row / image boundaries is killed by the x==0 / x==W-1 masks,
    # which also realise the conv's zero padding in x.
    col = lax.broadcasted_iota(jnp.int32, (nb, th, w, 1), 2).reshape(m, 1)
    left = jnp.where(col != 0,
                     jnp.concatenate([band[:1], band[:-1]], axis=0),
                     0.0).astype(x.dtype)
    right = jnp.where(col != w - 1,
                      jnp.concatenate([band[1:], band[-1:]], axis=0),
                      0.0).astype(x.dtype)

    acc = jnp.dot(left, w_ref[0], preferred_element_type=jnp.float32)
    acc += jnp.dot(band, w_ref[1], preferred_element_type=jnp.float32)
    acc += jnp.dot(right, w_ref[2], preferred_element_type=jnp.float32)
    acc += b_ref[...]
    o_ref[...] = jnp.maximum(acc, 0.0).astype(o_ref.dtype).reshape(nb, th, w, cout)


def _conv_vmem_bytes(nb, th, w, cin, cout):
    """(sublane, lane)-padding-aware VMEM estimate (bytes) per conv grid step."""
    wp = _ceil_to(w, 16)                    # bf16 sublane extent of (W, C) tiles
    cin_l = _ceil_to(cin, 128)
    c3_l = _ceil_to(3 * cin, 128)
    cout_l = _ceil_to(cout, 128)
    rows = nb * th * wp
    blocks = (
        2 * nb * th * wp * cin_l * 2        # centre input block (double-buffered)
        + 2 * 2 * nb * wp * cin_l * 2       # top + bottom halo rows (double-buffered)
        + 2 * nb * th * wp * cout_l * 2     # output block (double-buffered)
        + 2 * 3 * _ceil_to(3 * cin, 16) * cout_l * 2   # packed weights (double-buffered)
    )
    temps = (
        3 * rows * c3_l * 2                 # band + two shifted bf16 operands
        + 2 * rows * cout_l * 4             # f32 accumulator + one live partial
    )
    return blocks + temps


def _choose_conv_tiles(n, h, w, cin, cout):
    th = 1
    for t in range(h, 0, -1):
        if h % t == 0 and _conv_vmem_bytes(1, t, w, cin, cout) <= _TILE_BUDGET_BYTES:
            th = t
            break
    nb = 1
    if th == h:
        # Fold batch into M for small-spatial layers, but keep >= 2 grid steps
        # so both v7x TensorCores get work.
        for bt in range(n, 0, -1):
            if (n % bt == 0 and n // bt >= 2 and
                    _conv_vmem_bytes(bt, th, w, cin, cout) <= _TILE_BUDGET_BYTES):
                nb = bt
                break
    return nb, th


def conv3x3_relu(x, w, b, *, row_tile=None, batch_tile=None):
    """x: (N,H,W,Cin) bf16; w: (3,3,Cin,Cout); b: (Cout,) -> (N,H,W,Cout) bf16."""
    n, h, wd, cin = x.shape
    cout = w.shape[3]
    nb, th = _choose_conv_tiles(n, h, wd, cin, cout)
    if row_tile is not None:
        th = row_tile
    if batch_tile is not None:
        nb = batch_tile
    assert h % th == 0 and n % nb == 0, (n, h, nb, th)

    # kx-major weight packing: wk[kx][ky*cin + c, :] == w[ky, kx, c, :].
    wk = jnp.transpose(w, (1, 0, 2, 3)).reshape(3, 3 * cin, cout).astype(x.dtype)
    b2 = b.reshape(1, cout).astype(jnp.float32)

    def centre_map(i, r):
        return (i, r, 0, 0)

    def top_map(i, r):                      # single row just above the band
        return (i, jnp.maximum(r * th - 1, 0), 0, 0)

    def bot_map(i, r):                      # single row just below the band
        return (i, jnp.minimum(r * th + th, h - 1), 0, 0)

    return pl.pallas_call(
        _conv3x3_relu_kernel,
        out_shape=jax.ShapeDtypeStruct((n, h, wd, cout), x.dtype),
        grid=(n // nb, h // th),
        in_specs=[
            pl.BlockSpec((nb, th, wd, cin), centre_map),
            pl.BlockSpec((nb, 1, wd, cin), top_map),
            pl.BlockSpec((nb, 1, wd, cin), bot_map),
            # TODO(synk): pipeline_mode=pl.Buffered(1) -- this block is grid-constant.
            pl.BlockSpec((3, 3 * cin, cout), lambda i, r: (0, 0, 0)),
            pl.BlockSpec((1, cout), lambda i, r: (0, 0)),
        ],
        out_specs=pl.BlockSpec((nb, th, wd, cout), centre_map),
        compiler_params=_compiler_params(2),
    )(x, x, x, wk, b2)


# ----------------------------------------------------------------------------
# 2x2 maxpool kernel (stride 2), lane-dense layout
# ----------------------------------------------------------------------------
def _maxpool2x2_kernel(x_ref, o_ref):
    # x_ref: (1, TH, 2, Wo, 2*C) ; o_ref: (1, TH, Wo, C)
    c = o_ref.shape[-1]
    t = x_ref[...]
    rmax = jnp.maximum(t[:, :, 0], t[:, :, 1])          # row-pair max  (1,TH,Wo,2C)
    o_ref[...] = jnp.maximum(rmax[..., :c], rmax[..., c:])   # column-pair max


def _pool_vmem_bytes(th, wo, c):
    wop = _ceil_to(wo, 16)
    c_l = _ceil_to(c, 128)
    c2_l = _ceil_to(2 * c, 128)
    return (2 * th * 2 * wop * c2_l * 2     # input block (double-buffered)
            + 2 * th * wop * c_l * 2        # output block (double-buffered)
            + 2 * th * wop * c2_l * 2)      # in-kernel temporaries


def _choose_pool_tile(ho, wo, c):
    for t in range(ho, 0, -1):
        if ho % t == 0 and _pool_vmem_bytes(t, wo, c) <= _TILE_BUDGET_BYTES:
            return t
    return 1


def maxpool2x2(x):
    """x: (N, H, W, C) -> (N, H//2, W//2, C), kernel=stride=2 max pool."""
    n, h, w, c = x.shape
    ho, wo = h // 2, w // 2
    th = _choose_pool_tile(ho, wo, c)
    # (N,H,W,C) -> (N,Ho,2,Wo,2C): last dim = [even-col C | odd-col C], lane dense.
    x5 = x.reshape(n, ho, 2, wo, 2 * c)
    return pl.pallas_call(
        _maxpool2x2_kernel,
        out_shape=jax.ShapeDtypeStruct((n, ho, wo, c), x.dtype),
        grid=(n, ho // th),
        in_specs=[pl.BlockSpec((1, th, 2, wo, 2 * c),
                               lambda i, r: (i, r, 0, 0, 0))],
        out_specs=pl.BlockSpec((1, th, wo, c), lambda i, r: (i, r, 0, 0)),
        compiler_params=_compiler_params(2),
    )(x5)


# ----------------------------------------------------------------------------
# VGG16 "features" config (layers 0..29), sliced exactly as vggnet('vanilla')
# ----------------------------------------------------------------------------
_CONV_CFG = [(3, 64), (64, 64),
             (64, 128), (128, 128),
             (128, 256), (256, 256), (256, 256),
             (256, 512), (512, 512), (512, 512),
             (512, 512), (512, 512), (512, 512)]
_POOL_BEFORE = {2, 4, 7, 10}          # conv indices preceded by a maxpool
_SLICE_AFTER = {1, 3, 6, 9, 12}       # conv indices whose output is returned

VggOutputs = namedtuple("VggOutputs",
                        ["relu1_2", "relu2_2", "relu3_3", "relu4_3", "relu5_3"])


def init_params(key):
    ws, bs = [], []
    for i, (cin, cout) in enumerate(_CONV_CFG):
        kw = jax.random.fold_in(key, 2 * i)
        kb = jax.random.fold_in(key, 2 * i + 1)
        std = math.sqrt(2.0 / (9.0 * cin))                 # He init, deterministic
        ws.append(jax.random.normal(kw, (3, 3, cin, cout), jnp.float32) * std)
        bs.append(jax.random.normal(kb, (cout,), jnp.float32) * 0.01)
    return {"w": ws, "b": bs}


def vggnet_forward(x_nchw, params):
    """Mirrors vggnet.forward: returns VggOutputs of NCHW float32 activations."""
    h = jnp.transpose(x_nchw, (0, 2, 3, 1)).astype(jnp.bfloat16)   # NCHW -> NHWC
    outs = []
    for i in range(len(_CONV_CFG)):
        if i in _POOL_BEFORE:
            h = maxpool2x2(h)
        h = conv3x3_relu(h, params["w"][i], params["b"][i])
        if i in _SLICE_AFTER:
            outs.append(jnp.transpose(h.astype(jnp.float32), (0, 3, 1, 2)))
    return VggOutputs(*outs)


# ----------------------------------------------------------------------------
# Pure-JAX reference with matched (bf16 operand / f32 accumulate) precision
# ----------------------------------------------------------------------------
def _ref_conv_layer(h, w, b):
    y = lax.conv_general_dilated(
        h, w.astype(jnp.bfloat16), (1, 1), "SAME",
        dimension_numbers=("NHWC", "HWIO", "NHWC"),
        preferred_element_type=jnp.float32)
    return jnp.maximum(y + b, 0.0).astype(jnp.bfloat16)


def _ref_maxpool(h):
    return lax.reduce_window(h, jnp.array(-jnp.inf, h.dtype), lax.max,
                             (1, 2, 2, 1), (1, 2, 2, 1), "VALID")


def _ref_forward(x_nchw, params):
    h = jnp.transpose(x_nchw, (0, 2, 3, 1)).astype(jnp.bfloat16)
    outs = []
    for i in range(len(_CONV_CFG)):
        if i in _POOL_BEFORE:
            h = _ref_maxpool(h)
        h = _ref_conv_layer(h, params["w"][i], params["b"][i])
        if i in _SLICE_AFTER:
            outs.append(jnp.transpose(h.astype(jnp.float32), (0, 3, 1, 2)))
    return VggOutputs(*outs)


# ----------------------------------------------------------------------------
if __name__ == "__main__":
    root = jax.random.PRNGKey(0)
    kx, kp, kt = jax.random.split(root, 3)
    params = init_params(kp)

    k1, k2, k3, k4, k5, k6 = jax.random.split(kt, 6)

    # --- conv unit check (a): multi-band halo tiling -------------------------
    xt = jax.random.normal(k1, (2, 32, 32, 16), jnp.float32)
    wt = jax.random.normal(k2, (3, 3, 16, 32), jnp.float32) * 0.1
    bt = jax.random.normal(k3, (32,), jnp.float32) * 0.1
    got = conv3x3_relu(xt.astype(jnp.bfloat16), wt, bt, row_tile=8)
    want = _ref_conv_layer(xt.astype(jnp.bfloat16), wt, bt)
    err = float(jnp.max(jnp.abs(got.astype(jnp.float32) - want.astype(jnp.float32))))
    scale = float(jnp.max(jnp.abs(want.astype(jnp.float32)))) + 1e-6
    assert err <= 1e-2 * scale, ("conv halo unit check failed", err, scale)

    # --- conv unit check (b): batch folding (NB>1) together with halos -------
    xt2 = jax.random.normal(k4, (4, 16, 16, 8), jnp.float32)
    wt2 = jax.random.normal(k5, (3, 3, 8, 16), jnp.float32) * 0.2
    bt2 = jax.random.normal(k6, (16,), jnp.float32) * 0.1
    got2 = conv3x3_relu(xt2.astype(jnp.bfloat16), wt2, bt2,
                        row_tile=8, batch_tile=2)
    want2 = _ref_conv_layer(xt2.astype(jnp.bfloat16), wt2, bt2)
    err2 = float(jnp.max(jnp.abs(got2.astype(jnp.float32) - want2.astype(jnp.float32))))
    scale2 = float(jnp.max(jnp.abs(want2.astype(jnp.float32)))) + 1e-6
    assert err2 <= 1e-2 * scale2, ("conv batch-fold unit check failed", err2, scale2)

    # --- maxpool unit check (lane-dense layout) ------------------------------
    xpool = jax.random.normal(k1, (2, 16, 16, 64), jnp.float32).astype(jnp.bfloat16)
    assert bool(jnp.all(maxpool2x2(xpool) == _ref_maxpool(xpool))), \
        "maxpool unit check failed"

    # --- full network (4 pools => spatial divisible by 16) -------------------
    x = jax.random.normal(kx, (2, 3, 32, 32), jnp.float32)
    fwd = jax.jit(vggnet_forward)
    out = fwd(x, params)
    jax.block_until_ready(out)

    expected = [(2, 64, 32, 32), (2, 128, 16, 16), (2, 256, 8, 8),
                (2, 512, 4, 4), (2, 512, 2, 2)]
    for o, es in zip(out, expected):
        assert o.shape == es and o.dtype == jnp.float32, (o.shape, o.dtype, es)

    ref = jax.jit(_ref_forward)(x, params)
    for o, rr in zip(out, ref):
        maxdiff = float(jnp.max(jnp.abs(o - rr)))
        scale = float(jnp.max(jnp.abs(rr))) + 1e-6
        assert maxdiff <= 5e-2 * scale, (maxdiff, scale)

    print("KERNEL_OK")
</pallas_src>

<mosaic_0001>
module attributes {stable_mosaic.version = 11 : i64} {
  func.func @_conv3x3_relu_kernel(%arg0: i32, %arg1: i32, %arg2: memref<1x8x32x16xbf16, #tpu.memory_space<vmem>>, %arg3: memref<1x1x32x16xbf16, #tpu.memory_space<vmem>>, %arg4: memref<1x1x32x16xbf16, #tpu.memory_space<vmem>>, %arg5: memref<3x48x32xbf16, #tpu.memory_space<vmem>>, %arg6: memref<1x32xf32, #tpu.memory_space<vmem>>, %arg7: memref<1x8x32x32xbf16, #tpu.memory_space<vmem>>) attributes {dimension_semantics = [#tpu.dimension_semantics<parallel>, #tpu.dimension_semantics<parallel>], iteration_bounds = array<i64: 2, 4>, scalar_prefetch = 0 : i64, scratch_operands = 0 : i64, tpu.core_type = #tpu.core_type<tc>, window_params = [{transform_indices = @transform_0, window_bounds = array<i64: 1, 8, 32, 16>}, {transform_indices = @transform_1, window_bounds = array<i64: 1, 1, 32, 16>}, {transform_indices = @transform_2, window_bounds = array<i64: 1, 1, 32, 16>}, {pipeline_mode = #tpu.pipeline_mode<synchronous>, transform_indices = @transform_3, window_bounds = array<i64: 3, 48, 32>}, {pipeline_mode = #tpu.pipeline_mode<synchronous>, transform_indices = @transform_4, window_bounds = array<i64: 1, 32>}, {transform_indices = @transform_5, window_bounds = array<i64: 1, 8, 32, 32>}]} {
    %c0 = arith.constant 0 : index
    %c0_0 = arith.constant 0 : index
    %c0_1 = arith.constant 0 : index
    %c0_2 = arith.constant 0 : index
    %0 = vector.load %arg2[%c0, %c0_0, %c0_1, %c0_2] : memref<1x8x32x16xbf16, #tpu.memory_space<vmem>>, vector<1x8x32x16xbf16>
    %c0_3 = arith.constant 0 : index
    %c0_4 = arith.constant 0 : index
    %c0_5 = arith.constant 0 : index
    %c0_6 = arith.constant 0 : index
    %1 = vector.load %arg3[%c0_3, %c0_4, %c0_5, %c0_6] : memref<1x1x32x16xbf16, #tpu.memory_space<vmem>>, vector<1x1x32x16xbf16>
    %c0_i32 = arith.constant 0 : i32
    %2 = arith.cmpi sgt, %arg1, %c0_i32 : i32
    %3 = arith.extui %2 : i1 to i32
    %4 = arith.sitofp %3 : i32 to f32
    %5 = arith.truncf %4 : f32 to bf16
    %6 = vector.broadcast %5 : bf16 to vector<1x1x32x16xbf16>
    %7 = arith.mulf %1, %6 : vector<1x1x32x16xbf16>
    %c0_7 = arith.constant 0 : index
    %c0_8 = arith.constant 0 : index
    %c0_9 = arith.constant 0 : index
    %c0_10 = arith.constant 0 : index
    %8 = vector.load %arg4[%c0_7, %c0_8, %c0_9, %c0_10] : memref<1x1x32x16xbf16, #tpu.memory_space<vmem>>, vector<1x1x32x16xbf16>
    %c3_i32 = arith.constant 3 : i32
    %9 = arith.cmpi slt, %arg1, %c3_i32 : i32
    %10 = arith.extui %9 : i1 to i32
    %11 = arith.sitofp %10 : i32 to f32
    %12 = arith.truncf %11 : f32 to bf16
    %13 = vector.broadcast %12 : bf16 to vector<1x1x32x16xbf16>
    %14 = arith.mulf %8, %13 : vector<1x1x32x16xbf16>
    %15 = vector.extract_strided_slice %0 {offsets = [0, 0, 0, 0], sizes = [1, 7, 32, 16], strides = [1, 1, 1, 1]} : vector<1x8x32x16xbf16> to vector<1x7x32x16xbf16>
    %16 = tpu.concatenate %7, %15 in 1 : vector<1x1x32x16xbf16>, vector<1x7x32x16xbf16> -> vector<1x8x32x16xbf16>
    %17 = vector.extract_strided_slice %0 {offsets = [0, 1, 0, 0], sizes = [1, 7, 32, 16], strides = [1, 1, 1, 1]} : vector<1x8x32x16xbf16> to vector<1x7x32x16xbf16>
    %18 = tpu.concatenate %17, %14 in 1 : vector<1x7x32x16xbf16>, vector<1x1x32x16xbf16> -> vector<1x8x32x16xbf16>
    %19 = tpu.concatenate %16, %0, %18 in 3 : vector<1x8x32x16xbf16>, vector<1x8x32x16xbf16>, vector<1x8x32x16xbf16> -> vector<1x8x32x48xbf16>
    %20 = vector.shape_cast %19 : vector<1x8x32x48xbf16> to vector<256x48xbf16>
    %21 = tpu.iota {dimensions = array<i32: 2>} : vector<1x8x32x1xi32>
    %22 = vector.shape_cast %21 : vector<1x8x32x1xi32> to vector<256x1xi32>
    %c0_i32_11 = arith.constant 0 : i32
    %23 = vector.broadcast %c0_i32_11 : i32 to vector<256x1xi32>
    %24 = arith.cmpi ne, %22, %23 : vector<256x1xi32>
    %25 = vector.extract_strided_slice %20 {offsets = [0, 0], sizes = [1, 48], strides = [1, 1]} : vector<256x48xbf16> to vector<1x48xbf16>
    %26 = vector.extract_strided_slice %20 {offsets = [0, 0], sizes = [255, 48], strides = [1, 1]} : vector<256x48xbf16> to vector<255x48xbf16>
    %27 = tpu.concatenate %25, %26 in 0 : vector<1x48xbf16>, vector<255x48xbf16> -> vector<256x48xbf16>
    %cst = arith.constant 0.000000e+00 : f32
    %28 = arith.truncf %cst : f32 to bf16
    %29 = vector.shape_cast %24 : vector<256x1xi1> to vector<256x1xi1>
    %30 = vector.broadcast %29 : vector<256x1xi1> to vector<256x48xi1>
    %31 = vector.broadcast %28 : bf16 to vector<256x48xbf16>
    %32 = arith.select %30, %27, %31 : vector<256x48xi1>, vector<256x48xbf16>
    %c31_i32 = arith.constant 31 : i32
    %33 = vector.broadcast %c31_i32 : i32 to vector<256x1xi32>
    %34 = arith.cmpi ne, %22, %33 : vector<256x1xi32>
    %35 = vector.extract_strided_slice %20 {offsets = [1, 0], sizes = [255, 48], strides = [1, 1]} : vector<256x48xbf16> to vector<255x48xbf16>
    %36 = vector.extract_strided_slice %20 {offsets = [255, 0], sizes = [1, 48], strides = [1, 1]} : vector<256x48xbf16> to vector<1x48xbf16>
    %37 = tpu.concatenate %35, %36 in 0 : vector<255x48xbf16>, vector<1x48xbf16> -> vector<256x48xbf16>
    %cst_12 = arith.constant 0.000000e+00 : f32
    %38 = arith.truncf %cst_12 : f32 to bf16
    %39 = vector.shape_cast %34 : vector<256x1xi1> to vector<256x1xi1>
    %40 = vector.broadcast %39 : vector<256x1xi1> to vector<256x48xi1>
    %41 = vector.broadcast %38 : bf16 to vector<256x48xbf16>
    %42 = arith.select %40, %37, %41 : vector<256x48xi1>, vector<256x48xbf16>
    %c0_13 = arith.constant 0 : index
    %c0_14 = arith.constant 0 : index
    %c0_15 = arith.constant 0 : index
    %43 = vector.load %arg5[%c0_13, %c0_14, %c0_15] : memref<3x48x32xbf16, #tpu.memory_space<vmem>>, vector<1x48x32xbf16>
    %44 = vector.shape_cast %43 : vector<1x48x32xbf16> to vector<48x32xbf16>
    %cst_16 = arith.constant dense<0.000000e+00> : vector<256x32xf32>
    %45 = tpu.matmul %32, %44, %cst_16 {dimension_numbers = #tpu.dot_dimension_numbers<[1], [0], [0], [1], [0, 0, 1, 1], [], []>} : vector<256x48xbf16>, vector<48x32xbf16>, vector<256x32xf32> -> vector<256x32xf32>
    %c1 = arith.constant 1 : index
    %c0_17 = arith.constant 0 : index
    %c0_18 = arith.constant 0 : index
    %46 = vector.load %arg5[%c1, %c0_17, %c0_18] : memref<3x48x32xbf16, #tpu.memory_space<vmem>>, vector<1x48x32xbf16>
    %47 = vector.shape_cast %46 : vector<1x48x32xbf16> to vector<48x32xbf16>
    %cst_19 = arith.constant dense<0.000000e+00> : vector<256x32xf32>
    %48 = tpu.matmul %20, %47, %cst_19 {dimension_numbers = #tpu.dot_dimension_numbers<[1], [0], [0], [1], [0, 0, 1, 1], [], []>} : vector<256x48xbf16>, vector<48x32xbf16>, vector<256x32xf32> -> vector<256x32xf32>
    %49 = arith.addf %45, %48 : vector<256x32xf32>
    %c2 = arith.constant 2 : index
    %c0_20 = arith.constant 0 : index
    %c0_21 = arith.constant 0 : index
    %50 = vector.load %arg5[%c2, %c0_20, %c0_21] : memref<3x48x32xbf16, #tpu.memory_space<vmem>>, vector<1x48x32xbf16>
    %51 = vector.shape_cast %50 : vector<1x48x32xbf16> to vector<48x32xbf16>
    %cst_22 = arith.constant dense<0.000000e+00> : vector<256x32xf32>
    %52 = tpu.matmul %42, %51, %cst_22 {dimension_numbers = #tpu.dot_dimension_numbers<[1], [0], [0], [1], [0, 0, 1, 1], [], []>} : vector<256x48xbf16>, vector<48x32xbf16>, vector<256x32xf32> -> vector<256x32xf32>
    %53 = arith.addf %49, %52 : vector<256x32xf32>
    %c0_23 = arith.constant 0 : index
    %c0_24 = arith.constant 0 : index
    %54 = vector.load %arg6[%c0_23, %c0_24] : memref<1x32xf32, #tpu.memory_space<vmem>>, vector<1x32xf32>
    %55 = vector.broadcast %54 : vector<1x32xf32> to vector<256x32xf32>
    %56 = arith.addf %53, %55 : vector<256x32xf32>
    %cst_25 = arith.constant 0.000000e+00 : f32
    %57 = vector.broadcast %cst_25 : f32 to vector<256x32xf32>
    %58 = arith.maximumf %56, %57 : vector<256x32xf32>
    %59 = arith.truncf %58 : vector<256x32xf32> to vector<256x32xbf16>
    %60 = vector.shape_cast %59 : vector<256x32xbf16> to vector<1x8x32x32xbf16>
    %c0_26 = arith.constant 0 : index
    %c0_27 = arith.constant 0 : index
    %c0_28 = arith.constant 0 : index
    %c0_29 = arith.constant 0 : index
    %61 = vector.load %arg7[%c0_26, %c0_27, %c0_28, %c0_29] : memref<1x8x32x32xbf16, #tpu.memory_space<vmem>>, vector<1x8x32x32xbf16>
    tpu.vector_store %arg7[%c0_26, %c0_27, %c0_28, %c0_29], %60 {strides = array<i32>} : memref<1x8x32x32xbf16, #tpu.memory_space<vmem>>, vector<1x8x32x32xbf16>,
    return
  }
  func.func @transform_0(%arg0: i32, %arg1: i32) -> (i32, i32, i32, i32) {
    %c0_i32 = arith.constant 0 : i32
    %c0_i32_0 = arith.constant 0 : i32
    %c0_i32_1 = arith.constant 0 : i32
    return %arg0, %arg1, %c0_i32, %c0_i32_0 : i32, i32, i32, i32
  }
  func.func @transform_1(%arg0: i32, %arg1: i32) -> (i32, i32, i32, i32) {
    %c8_i32 = arith.constant 8 : i32
    %0 = arith.muli %arg1, %c8_i32 : i32
    %c1_i32 = arith.constant 1 : i32
    %1 = arith.subi %0, %c1_i32 : i32
    %c0_i32 = arith.constant 0 : i32
    %2 = arith.maxsi %1, %c0_i32 : i32
    %c0_i32_0 = arith.constant 0 : i32
    %c0_i32_1 = arith.constant 0 : i32
    %c0_i32_2 = arith.constant 0 : i32
    return %arg0, %2, %c0_i32_0, %c0_i32_1 : i32, i32, i32, i32
  }
  func.func @transform_2(%arg0: i32, %arg1: i32) -> (i32, i32, i32, i32) {
    %c8_i32 = arith.constant 8 : i32
    %0 = arith.muli %arg1, %c8_i32 : i32
    %c8_i32_0 = arith.constant 8 : i32
    %1 = arith.addi %0, %c8_i32_0 : i32
    %c31_i32 = arith.constant 31 : i32
    %2 = arith.minsi %1, %c31_i32 : i32
    %c0_i32 = arith.constant 0 : i32
    %c0_i32_1 = arith.constant 0 : i32
    %c0_i32_2 = arith.constant 0 : i32
    return %arg0, %2, %c0_i32, %c0_i32_1 : i32, i32, i32, i32
  }
  func.func @transform_3(%arg0: i32, %arg1: i32) -> (i32, i32, i32) {
    %c0_i32 = arith.constant 0 : i32
    %c0_i32_0 = arith.constant 0 : i32
    %c0_i32_1 = arith.constant 0 : i32
    %c0_i32_2 = arith.constant 0 : i32
    return %c0_i32, %c0_i32_0, %c0_i32_1 : i32, i32, i32
  }
  func.func @transform_4(%arg0: i32, %arg1: i32) -> (i32, i32) {
    %c0_i32 = arith.constant 0 : i32
    %c0_i32_0 = arith.constant 0 : i32
    %c0_i32_1 = arith.constant 0 : i32
    return %c0_i32, %c0_i32_0 : i32, i32
  }
  func.func @transform_5(%arg0: i32, %arg1: i32) -> (i32, i32, i32, i32) {
    %c0_i32 = arith.constant 0 : i32
    %c0_i32_0 = arith.constant 0 : i32
    %c0_i32_1 = arith.constant 0 : i32
    return %arg0, %arg1, %c0_i32, %c0_i32_0 : i32, i32, i32, i32
  }
}

</mosaic_0001>

<llo_original>
// kernel: tpu_custom_call.1
$region0: #{tpu_custom_call.1}
  #allocation0 [shape = 'u32[]', space=smem, size = 0x4, offset = 0x4, fixed_abs, tag = 'smem constant byte address 0x4 - core index']
  #allocation1 [shape = 'u32[144,128]{1,0:T(1,128)}', space=vmem, size = 0x12000, scoped, tag = 'internal scratch']
  %s0 = inlined_call_operand.vmem [shape: bf16[2,32,32,16], index: 0, kind: input, shape index: {}]
  %s1 = inlined_call_operand.vmem [shape: bf16[2,32,32,16], index: 1, kind: input, shape index: {}]
  %s2 = inlined_call_operand.vmem [shape: bf16[2,32,32,16], index: 2, kind: input, shape index: {}]
  %s3 = inlined_call_operand.vmem [shape: bf16[3,48,32], index: 3, kind: input, shape index: {}]
  %s4 = inlined_call_operand.vmem [shape: f32[1,32], index: 4, kind: input, shape index: {}]
  %s5 = inlined_call_operand.hbm [shape: bf16[2,32,32,32], index: 5, kind: output, shape index: {}]
  %s6 = sld [smem:[#allocation0]]
  $region53: #{tpu_custom_call.1} parent=0
    _
  %s8 = ssub.s32 1, %s6
  %s9 = scalar_select 0, %s8, %s6
  $region1: #{tpu_custom_call.1} parent=0
    #allocation2 [shape = 'u8[131072]{0}', space=vmem, size = 0x20000, scoped, tag = 'output window, operand 0']
    #allocation3 [shape = 's32[2]{0}', space=sflag, size = 0x8, scoped, tag = 'scoped memory for tpu_custom_call.1']
    %10 = vsyncpa [#allocation3], 0
    %s11 = scalar_lea.sflag [#allocation3], 1
    %12 = vsyncpa %s11, 0
    loop: start=0, step=1, limit=10
    $region2: #{tpu_custom_call.1} parent=1 // loop_pre_header
      _
    $region3: #{tpu_custom_call.1} parent=1 // loop_header
      %s14 = sphi 0, %s18
      %p15 = scmp.ge.s32.totalorder %s14, 10
      %s21 = sphi 0, %s33
      %s22 = sphi 0, %s29
      %s23 = sphi 0, %s21
      %s24 = sphi 0, %s22
      %s25 = sphi 0, %s23
      %s26 = sphi 0, %s24
      %s38 = sphi 0, %s40
      %s41 = sphi 0, %s38
      %s42 = sphi 0, %s41
      %s58 = sphi 0, %s42
      %s74 = sphi 0, %s76
      %s77 = sphi 0, %s74
      %s78 = sphi 0, %s77
      %s94 = sphi 0, %s78
      %s110 = sphi 0, %s112
      %s113 = sphi 0, %s110
      %s114 = sphi 0, %s113
      %s130 = sphi 0, %s114
      %s134 = sphi 0, %s134
      %s136 = sphi 0, %s134
      %s137 = sphi 0, %s136
      %s151 = sphi 0, %s137
      %s155 = sphi 0, %s155
      %s157 = sphi 0, %s155
      %s158 = sphi 0, %s157
      %s172 = sphi 0, %s158
      %s180 = sphi 0, %s182
      %s183 = sphi 0, %s180
      %s184 = sphi 0, %s183
      %s200 = sphi 0, %s184
    $region4: #{tpu_custom_call.1} parent=1 // loop_header_branch
      %17 = sbr.rel (%p15) target = $region8
    $region5: #{tpu_custom_call.1} parent=1 // loop_body
      %s19 = ssub.s32 %s14, 1
      %s20 = ssub.s32 %s14, 2
      %s27 = sadd.s32 1, %s22
      %p28 = scmp.ge.s32.totalorder %s27, 4
      %s29 = scalar_select %p28, 0, %s27
      %s30 = sadd.s32 1, %s21
      %s31 = scalar_select %p28, %s30, %s21
      %p32 = scmp.ge.s32.totalorder %s31, 2
      %s33 = scalar_select %p32, 0, %s31
      %s34 = ssub.s32 %s21, %s33
      %s35 = ssub.s32 %s22, %s29
      %s36 = sor.u32 %s34, %s35
      %p37 = scmp.eq.s32.totalorder %s36, 0
      %s39 = sadd.s32 %s38, 1
      %s40 = scalar_select %p37, %s38, %s39
      %p43 = pneg %p37
      %p44 = scmp.eq.s32.totalorder %s14, 7
      %p45 = por %p43, %p44
      %p46 = scmp.ne.s32.totalorder %s38, %s41
      %p47 = scmp.eq.s32.totalorder %s14, 0
      %p48 = por %p46, %p47
      %p49 = scmp.ne.s32.totalorder %s38, %s41
      %p50 = scmp.eq.s32.totalorder %s19, 7
      %p51 = por %p49, %p50
      %p52 = scmp.ne.s32.totalorder %s41, %s42
      %p53 = scmp.eq.s32.totalorder %s19, 0
      %p54 = por %p52, %p53
      %p55 = scmp.ne.s32.totalorder %s41, %s42
      %p56 = scmp.eq.s32.totalorder %s20, 7
      %p57 = por %p55, %p56
      %p59 = scmp.ne.s32.totalorder %s42, %s58
      %p60 = scmp.eq.s32.totalorder %s20, 0
      %p61 = por %p59, %p60
      %s62 = smul.u32 %s22, 8
      %s63 = ssub.s32 %s62, 1
      %p64 = scmp.gt.s32.totalorder %s63, 0
      %s65 = scalar_select %p64, %s63, 0
      %s66 = smul.u32 %s29, 8
      %s67 = ssub.s32 %s66, 1
      %p68 = scmp.gt.s32.totalorder %s67, 0
      %s69 = scalar_select %p68, %s67, 0
      %s70 = ssub.s32 %s21, %s33
      %s71 = ssub.s32 %s65, %s69
      %s72 = sor.u32 %s70, %s71
      %p73 = scmp.eq.s32.totalorder %s72, 0
      %s75 = sadd.s32 %s74, 1
      %s76 = scalar_select %p73, %s74, %s75
      %p79 = pneg %p73
      %p80 = scmp.eq.s32.totalorder %s14, 7
      %p81 = por %p79, %p80
      %p82 = scmp.ne.s32.totalorder %s74, %s77
      %p83 = scmp.eq.s32.totalorder %s14, 0
      %p84 = por %p82, %p83
      %p85 = scmp.ne.s32.totalorder %s74, %s77
      %p86 = scmp.eq.s32.totalorder %s19, 7
      %p87 = por %p85, %p86
      %p88 = scmp.ne.s32.totalorder %s77, %s78
      %p89 = scmp.eq.s32.totalorder %s19, 0
      %p90 = por %p88, %p89
      %p91 = scmp.ne.s32.totalorder %s77, %s78
      %p92 = scmp.eq.s32.totalorder %s20, 7
      %p93 = por %p91, %p92
      %p95 = scmp.ne.s32.totalorder %s78, %s94
      %p96 = scmp.eq.s32.totalorder %s20, 0
      %p97 = por %p95, %p96
      %s98 = smul.u32 %s22, 8
      %s99 = sadd.s32 %s98, 8
      %p100 = scmp.lt.s32.totalorder %s99, 31
      %s101 = scalar_select %p100, %s99, 31
      %s102 = smul.u32 %s29, 8
      %s103 = sadd.s32 %s102, 8
      %p104 = scmp.lt.s32.totalorder %s103, 31
      %s105 = scalar_select %p104, %s103, 31
      %s106 = ssub.s32 %s21, %s33
      %s107 = ssub.s32 %s101, %s105
      %s108 = sor.u32 %s106, %s107
      %p109 = scmp.eq.s32.totalorder %s108, 0
      %s111 = sadd.s32 %s110, 1
      %s112 = scalar_select %p109, %s110, %s111
      %p115 = pneg %p109
      %p116 = scmp.eq.s32.totalorder %s14, 7
      %p117 = por %p115, %p116
      %p118 = scmp.ne.s32.totalorder %s110, %s113
      %p119 = scmp.eq.s32.totalorder %s14, 0
      %p120 = por %p118, %p119
      %p121 = scmp.ne.s32.totalorder %s110, %s113
      %p122 = scmp.eq.s32.totalorder %s19, 7
      %p123 = por %p121, %p122
      %p124 = scmp.ne.s32.totalorder %s113, %s114
      %p125 = scmp.eq.s32.totalorder %s19, 0
      %p126 = por %p124, %p125
      %p127 = scmp.ne.s32.totalorder %s113, %s114
      %p128 = scmp.eq.s32.totalorder %s20, 7
      %p129 = por %p127, %p128
      %p131 = scmp.ne.s32.totalorder %s114, %s130
      %p132 = scmp.eq.s32.totalorder %s20, 0
      %p133 = por %p131, %p132
      %s135 = sadd.s32 %s134, 1
      %p138 = scmp.eq.s32.totalorder %s14, 7
      %p139 = scmp.ne.s32.totalorder %s134, %s136
      %p140 = scmp.eq.s32.totalorder %s14, 0
      %p141 = por %p139, %p140
      %p142 = scmp.ne.s32.totalorder %s134, %s136
      %p143 = scmp.eq.s32.totalorder %s19, 7
      %p144 = por %p142, %p143
      %p145 = scmp.ne.s32.totalorder %s136, %s137
      %p146 = scmp.eq.s32.totalorder %s19, 0
      %p147 = por %p145, %p146
      %p148 = scmp.ne.s32.totalorder %s136, %s137
      %p149 = scmp.eq.s32.totalorder %s20, 7
      %p150 = por %p148, %p149
      %p152 = scmp.ne.s32.totalorder %s137, %s151
      %p153 = scmp.eq.s32.totalorder %s20, 0
      %p154 = por %p152, %p153
      %s156 = sadd.s32 %s155, 1
      %p159 = scmp.eq.s32.totalorder %s14, 7
      %p160 = scmp.ne.s32.totalorder %s155, %s157
      %p161 = scmp.eq.s32.totalorder %s14, 0
      %p162 = por %p160, %p161
      %p163 = scmp.ne.s32.totalorder %s155, %s157
      %p164 = scmp.eq.s32.totalorder %s19, 7
      %p165 = por %p163, %p164
      %p166 = scmp.ne.s32.totalorder %s157, %s158
      %p167 = scmp.eq.s32.totalorder %s19, 0
      %p168 = por %p166, %p167
      %p169 = scmp.ne.s32.totalorder %s157, %s158
      %p170 = scmp.eq.s32.totalorder %s20, 7
      %p171 = por %p169, %p170
      %p173 = scmp.ne.s32.totalorder %s158, %s172
      %p174 = scmp.eq.s32.totalorder %s20, 0
      %p175 = por %p173, %p174
      %s176 = ssub.s32 %s21, %s33
      %s177 = ssub.s32 %s22, %s29
      %s178 = sor.u32 %s176, %s177
      %p179 = scmp.eq.s32.totalorder %s178, 0
      %s181 = sadd.s32 %s180, 1
      %s182 = scalar_select %p179, %s180, %s181
      %p185 = pneg %p179
      %p186 = scmp.eq.s32.totalorder %s14, 7
      %p187 = por %p185, %p186
      %p188 = scmp.ne.s32.totalorder %s180, %s183
      %p189 = scmp.eq.s32.totalorder %s14, 0
      %p190 = por %p188, %p189
      %p191 = scmp.ne.s32.totalorder %s180, %s183
      %p192 = scmp.eq.s32.totalorder %s19, 7
      %p193 = por %p191, %p192
      %p194 = scmp.ne.s32.totalorder %s183, %s184
      %p195 = scmp.eq.s32.totalorder %s19, 0
      %p196 = por %p194, %p195
      %p197 = scmp.ne.s32.totalorder %s183, %s184
      %p198 = scmp.eq.s32.totalorder %s20, 7
      %p199 = por %p197, %p198
      %p201 = scmp.ne.s32.totalorder %s184, %s200
      %p202 = scmp.eq.s32.totalorder %s20, 0
      %p203 = por %p201, %p202
      %p204 = scmp.le.s32.totalorder 1, %s14
      %p205 = scmp.lt.s32.totalorder %s14, 9
      %p206 = pnand %p204, %p205
      %p207 = pneg %p206
      // Predicated region
      $region9: #{tpu_custom_call.1} parent=5 // pred_check
        _
      $region10: #{tpu_custom_call.1} parent=5 // pred_check_branch
        %209 = sbr.rel (%p206) target = $region12
      $region11: #{tpu_custom_call.1} parent=5 // pred_region
        %s210 = ssub.s32 %s14, 1
        // Predicated region
        $region13: #{tpu_custom_call.1} parent=11 // pred_check
          %p211 = pneg %p147
        $region14: #{tpu_custom_call.1} parent=11 // pred_check_branch
          %213 = sbr.rel (%p211) target = $region16
        $region15: #{tpu_custom_call.1} parent=11 // pred_region
          _
        $region16: #{tpu_custom_call.1} parent=11 // pred_fallthru
          _
        // Predicated region
        $region17: #{tpu_custom_call.1} parent=11 // pred_check
          %p214 = pneg %p168
        $region18: #{tpu_custom_call.1} parent=11 // pred_check_branch
          %216 = sbr.rel (%p214) target = $region20
        $region19: #{tpu_custom_call.1} parent=11 // pred_region
          _
        $region20: #{tpu_custom_call.1} parent=11 // pred_fallthru
          _
      $region12: #{tpu_custom_call.1} parent=5 // pred_fallthru
        _
      %p217 = scmp.lt.s32.totalorder %s14, 8
      // Predicated region
      $region21: #{tpu_custom_call.1} parent=5 // pred_check
        %p218 = pneg %p217
      $region22: #{tpu_custom_call.1} parent=5 // pred_check_branch
        %220 = sbr.rel (%p218) target = $region24
      $region23: #{tpu_custom_call.1} parent=5 // pred_region
        // Predicated region
        $region25: #{tpu_custom_call.1} parent=23 // pred_check
          %p221 = pneg %p48
        $region26: #{tpu_custom_call.1} parent=23 // pred_check_branch
          %223 = sbr.rel (%p221) target = $region28
        $region27: #{tpu_custom_call.1} parent=23 // pred_region
          %s224 = smul.u32 8, %s22
          %p225 = scmp.lt.s32.totalorder %s21, 1
          %s226 = scalar_select %p225, %s21, 1
          %p227 = scmp.lt.s32.totalorder %s224, 31
          %s228 = scalar_select %p227, %s224, 31
          %s229 = smul.addr %s228, 4
          %s230 = smul.addr %s226, 128
          %s231 = sadd.s32 %s229, %s230
          %s232 = smul.addr %s231, 4
          %s233 = scalar_lea.vmem %s0, %s232
          %s234 = smul.u32 8, %s22
        $region28: #{tpu_custom_call.1} parent=23 // pred_fallthru
          _
        // Predicated region
        $region29: #{tpu_custom_call.1} parent=23 // pred_check
          %p235 = pneg %p84
        $region30: #{tpu_custom_call.1} parent=23 // pred_check_branch
          %237 = sbr.rel (%p235) target = $region32
        $region31: #{tpu_custom_call.1} parent=23 // pred_region
          %s238 = smul.u32 %s22, 8
          %s239 = ssub.s32 %s238, 1
          %p240 = scmp.gt.s32.totalorder %s239, 0
          %s241 = scalar_select %p240, %s239, 0
          %p242 = scmp.lt.s32.totalorder %s21, 1
          %s243 = scalar_select %p242, %s21, 1
          %p244 = scmp.lt.s32.totalorder %s241, 31
          %s245 = scalar_select %p244, %s241, 31
          %s246 = smul.addr %s245, 4
          %s247 = smul.addr %s243, 128
          %s248 = sadd.s32 %s246, %s247
          %s249 = smul.addr %s248, 4
          %s250 = scalar_lea.vmem %s1, %s249
          %s251 = smul.u32 %s22, 8
          %s252 = ssub.s32 %s251, 1
          %p253 = scmp.gt.s32.totalorder %s252, 0
          %s254 = scalar_select %p253, %s252, 0
        $region32: #{tpu_custom_call.1} parent=23 // pred_fallthru
          _
        // Predicated region
        $region33: #{tpu_custom_call.1} parent=23 // pred_check
          %p255 = pneg %p120
        $region34: #{tpu_custom_call.1} parent=23 // pred_check_branch
          %257 = sbr.rel (%p255) target = $region36
        $region35: #{tpu_custom_call.1} parent=23 // pred_region
          %s258 = smul.u32 %s22, 8
          %s259 = sadd.s32 %s258, 8
          %p260 = scmp.lt.s32.totalorder %s259, 31
          %s261 = scalar_select %p260, %s259, 31
          %p262 = scmp.lt.s32.totalorder %s21, 1
          %s263 = scalar_select %p262, %s21, 1
          %p264 = scmp.lt.s32.totalorder %s261, 31
          %s265 = scalar_select %p264, %s261, 31
          %s266 = smul.addr %s265, 4
          %s267 = smul.addr %s263, 128
          %s268 = sadd.s32 %s266, %s267
          %s269 = smul.addr %s268, 4
          %s270 = scalar_lea.vmem %s2, %s269
          %s271 = smul.u32 %s22, 8
          %s272 = sadd.s32 %s271, 8
          %p273 = scmp.lt.s32.totalorder %s272, 31
          %s274 = scalar_select %p273, %s272, 31
        $region36: #{tpu_custom_call.1} parent=23 // pred_fallthru
          _
      $region24: #{tpu_custom_call.1} parent=5 // pred_fallthru
        _
      %p275 = scmp.le.s32.totalorder 1, %s14
      %p276 = scmp.lt.s32.totalorder %s14, 9
      %p277 = pnand %p275, %p276
      %p278 = pneg %p277
      // Predicated region
      $region37: #{tpu_custom_call.1} parent=5 // pred_check
        _
      $region38: #{tpu_custom_call.1} parent=5 // pred_check_branch
        %280 = sbr.rel (%p277) target = $region40
      $region39: #{tpu_custom_call.1} parent=5 // pred_region
        %s281 = ssub.s32 %s14, 1
        %s282 = smul.u32 8, %s24
        %p283 = scmp.lt.s32.totalorder %s23, 1
        %s284 = scalar_select %p283, %s23, 1
        %p285 = scmp.lt.s32.totalorder %s282, 31
        %s286 = scalar_select %p285, %s282, 31
        %s287 = smul.addr %s286, 4
        %s288 = smul.addr %s284, 128
        %s289 = sadd.s32 %s287, %s288
        %s290 = smul.addr %s289, 4
        %s291 = scalar_lea.vmem %s0, %s290
        %p292 = pneg %p54
        %p293 = pneg %p51
        %s294 = smul.u32 %s24, 8
        %s295 = ssub.s32 %s294, 1
        %p296 = scmp.gt.s32.totalorder %s295, 0
        %s297 = scalar_select %p296, %s295, 0
        %p298 = scmp.lt.s32.totalorder %s23, 1
        %s299 = scalar_select %p298, %s23, 1
        %p300 = scmp.lt.s32.totalorder %s297, 31
        %s301 = scalar_select %p300, %s297, 31
        %s302 = smul.addr %s301, 4
        %s303 = smul.addr %s299, 128
        %s304 = sadd.s32 %s302, %s303
        %s305 = smul.addr %s304, 4
        %s306 = scalar_lea.vmem %s1, %s305
        %p307 = pneg %p90
        %p308 = pneg %p87
        %s309 = smul.u32 %s24, 8
        %s310 = sadd.s32 %s309, 8
        %p311 = scmp.lt.s32.totalorder %s310, 31
        %s312 = scalar_select %p311, %s310, 31
        %p313 = scmp.lt.s32.totalorder %s23, 1
        %s314 = scalar_select %p313, %s23, 1
        %p315 = scmp.lt.s32.totalorder %s312, 31
        %s316 = scalar_select %p315, %s312, 31
        %s317 = smul.addr %s316, 4
        %s318 = smul.addr %s314, 128
        %s319 = sadd.s32 %s317, %s318
        %s320 = smul.addr %s319, 4
        %s321 = scalar_lea.vmem %s2, %s320
        %p322 = pneg %p126
        %p323 = pneg %p123
        %p324 = pneg %p147
        %p325 = pneg %p144
        %p326 = pneg %p168
        %p327 = pneg %p165
        %p328 = pneg %p196
        %p329 = pneg %p193
        %s330 = sand.u32 %s183, 1
        %s331 = scalar_lea.sflag [#allocation3], %s330
        %s332 = sand.u32 %s183, 1
        %s333 = smul.addr %s332, 128
        %s334 = scalar_lea.vmem [#allocation2], %s333
        %s335 = smul.u32 8, %s24
        %p336 = scmp.lt.s32.totalorder %s23, 1
        %s337 = scalar_select %p336, %s23, 1
        %p338 = scmp.lt.s32.totalorder %s335, 31
        %s339 = scalar_select %p338, %s335, 31
        %s340 = smul.addr %s339, 4
        %s341 = smul.addr %s337, 128
        %s342 = sadd.s32 %s340, %s341
        %s343 = smul.addr %s342, 4
        %s344 = scalar_lea.vmem %s0, %s343
        %s345 = smul.u32 8, %s24
        %s346 = smul.u32 %s24, 8
        %s347 = ssub.s32 %s346, 1
        %p348 = scmp.gt.s32.totalorder %s347, 0
        %s349 = scalar_select %p348, %s347, 0
        %p350 = scmp.lt.s32.totalorder %s23, 1
        %s351 = scalar_select %p350, %s23, 1
        %p352 = scmp.lt.s32.totalorder %s349, 31
        %s353 = scalar_select %p352, %s349, 31
        %s354 = smul.addr %s353, 4
        %s355 = smul.addr %s351, 128
        %s356 = sadd.s32 %s354, %s355
        %s357 = smul.addr %s356, 4
        %s358 = scalar_lea.vmem %s1, %s357
        %s359 = smul.u32 %s24, 8
        %s360 = ssub.s32 %s359, 1
        %p361 = scmp.gt.s32.totalorder %s360, 0
        %s362 = scalar_select %p361, %s360, 0
        %s363 = smul.u32 %s24, 8
        %s364 = sadd.s32 %s363, 8
        %p365 = scmp.lt.s32.totalorder %s364, 31
        %s366 = scalar_select %p365, %s364, 31
        %p367 = scmp.lt.s32.totalorder %s23, 1
        %s368 = scalar_select %p367, %s23, 1
        %p369 = scmp.lt.s32.totalorder %s366, 31
        %s370 = scalar_select %p369, %s366, 31
        %s371 = smul.addr %s370, 4
        %s372 = smul.addr %s368, 128
        %s373 = sadd.s32 %s371, %s372
        %s374 = smul.addr %s373, 4
        %s375 = scalar_lea.vmem %s2, %s374
        %s376 = smul.u32 %s24, 8
        %s377 = sadd.s32 %s376, 8
        %p378 = scmp.lt.s32.totalorder %s377, 31
        %s379 = scalar_select %p378, %s377, 31
        %s380 = smul.u32 8, %s24
        %v384 = vld [vmem:[%s344] sm:$0xf]
        %v385 = vld [vmem:[%s344 + $0x4] sm:$0xf]
        %v386 = vld [vmem:[%s344 + $0x8] sm:$0xf]
        %v387 = vld [vmem:[%s344 + $0xc] sm:$0xf]
        %v388 = vld [vmem:[%s344 + $0x10] sm:$0xf]
        %v389 = vld [vmem:[%s344 + $0x14] sm:$0xf]
        %v390 = vld [vmem:[%s344 + $0x18] sm:$0xf]
        %v391 = vld [vmem:[%s344 + $0x1c] sm:$0xf]
        %v392 = vld [vmem:[%s344 + $0x20] sm:$0xf]
        %v393 = vld [vmem:[%s344 + $0x24] sm:$0xf]
        %v394 = vld [vmem:[%s344 + $0x28] sm:$0xf]
        %v395 = vld [vmem:[%s344 + $0x2c] sm:$0xf]
        %v396 = vld [vmem:[%s344 + $0x30] sm:$0xf]
        %v397 = vld [vmem:[%s344 + $0x34] sm:$0xf]
        %v398 = vld [vmem:[%s344 + $0x38] sm:$0xf]
        %v399 = vld [vmem:[%s344 + $0x3c] sm:$0xf]
        %v400 = vld [vmem:[%s344 + $0x40] sm:$0xf]
        %v401 = vld [vmem:[%s344 + $0x44] sm:$0xf]
        %v402 = vld [vmem:[%s344 + $0x48] sm:$0xf]
        %v403 = vld [vmem:[%s344 + $0x4c] sm:$0xf]
        %v404 = vld [vmem:[%s344 + $0x50] sm:$0xf]
        %v405 = vld [vmem:[%s344 + $0x54] sm:$0xf]
        %v406 = vld [vmem:[%s344 + $0x58] sm:$0xf]
        %v407 = vld [vmem:[%s344 + $0x5c] sm:$0xf]
        %v408 = vld [vmem:[%s344 + $0x60] sm:$0xf]
        %v409 = vld [vmem:[%s344 + $0x64] sm:$0xf]
        %v410 = vld [vmem:[%s344 + $0x68] sm:$0xf]
        %v411 = vld [vmem:[%s344 + $0x6c] sm:$0xf]
        %v412 = vld [vmem:[%s344 + $0x70] sm:$0xf]
        %v413 = vld [vmem:[%s344 + $0x74] sm:$0xf]
        %v414 = vld [vmem:[%s344 + $0x78] sm:$0xf]
        %v415 = vld [vmem:[%s344 + $0x7c] sm:$0xf]
        %v416 = vld [vmem:[%s358] sm:$0xf]
        %v417 = vld [vmem:[%s358 + $0x4] sm:$0xf]
        %v418 = vld [vmem:[%s358 + $0x8] sm:$0xf]
        %v419 = vld [vmem:[%s358 + $0xc] sm:$0xf]
        %p420 = scmp.gt.s32.totalorder %s24, 0
        %s421 = scalar_select %p420, 1, 0
        %s422 = scvt.s32.f32 %s421
        %p424 = scmp.ne.f32.partialorder %s422, %s422
        %s425 = sshrl.u32 %s422, 16
        %s426 = sand.u32 %s425, 1
        %s427 = sadd.s32 32767, %s426
        %s428 = sadd.s32 %s422, %s427
        %s429 = sand.u32 %s428, 4294901760
        %s430 = scalar_select %p424, 2143289344, %s429
        %s432 = sshrl.u32 %s430, 16
        %s433 = sshll.u32 %s432, 16
        %s434 = sor.u32 %s432, %s433
        %v435 = vstv %s434
        %v437 = vmul.bf16 %v416, %v435
        %v438 = vmul.bf16 %v417, %v435
        %v439 = vmul.bf16 %v418, %v435
        %v440 = vmul.bf16 %v419, %v435
        %v441 = vld [vmem:[%s375] sm:$0xf]
        %v442 = vld [vmem:[%s375 + $0x4] sm:$0xf]
        %v443 = vld [vmem:[%s375 + $0x8] sm:$0xf]
        %v444 = vld [vmem:[%s375 + $0xc] sm:$0xf]
        %p445 = scmp.lt.s32.totalorder %s24, 3
        %s446 = scalar_select %p445, 1, 0
        %s447 = scvt.s32.f32 %s446
        %p449 = scmp.ne.f32.partialorder %s447, %s447
        %s450 = sshrl.u32 %s447, 16
        %s451 = sand.u32 %s450, 1
        %s452 = sadd.s32 32767, %s451
        %s453 = sadd.s32 %s447, %s452
        %s454 = sand.u32 %s453, 4294901760
        %s455 = scalar_select %p449, 2143289344, %s454
        %s457 = sshrl.u32 %s455, 16
        %s458 = sshll.u32 %s457, 16
        %s459 = sor.u32 %s457, %s458
        %v460 = vstv %s459
        %v462 = vmul.bf16 %v441, %v460
        %v463 = vmul.bf16 %v442, %v460
        %v464 = vmul.bf16 %v443, %v460
        %v465 = vmul.bf16 %v444, %v460
        %v498 = vunpack.c.l.b16 %v437
        %v499 = vunpack.c.l.b16 %v438
        %v500 = vunpack.c.l.b16 %v439
        %v501 = vunpack.c.l.b16 %v440
        %v502 = vunpack.c.l.b16 %v384
        %v503 = vunpack.c.l.b16 %v385
        %v504 = vunpack.c.l.b16 %v386
        %v505 = vunpack.c.l.b16 %v387
        %v506 = vunpack.c.l.b16 %v388
        %v507 = vunpack.c.l.b16 %v389
        %v508 = vunpack.c.l.b16 %v390
        %v509 = vunpack.c.l.b16 %v391
        %v510 = vunpack.c.l.b16 %v392
        %v511 = vunpack.c.l.b16 %v393
        %v512 = vunpack.c.l.b16 %v394
        %v513 = vunpack.c.l.b16 %v395
        %v514 = vunpack.c.l.b16 %v396
        %v515 = vunpack.c.l.b16 %v397
        %v516 = vunpack.c.l.b16 %v398
        %v517 = vunpack.c.l.b16 %v399
        %v518 = vunpack.c.l.b16 %v400
        %v519 = vunpack.c.l.b16 %v401
        %v520 = vunpack.c.l.b16 %v402
        %v521 = vunpack.c.l.b16 %v403
        %v522 = vunpack.c.l.b16 %v404
        %v523 = vunpack.c.l.b16 %v405
        %v524 = vunpack.c.l.b16 %v406
        %v525 = vunpack.c.l.b16 %v407
        %v526 = vunpack.c.l.b16 %v408
        %v527 = vunpack.c.l.b16 %v409
        %v528 = vunpack.c.l.b16 %v410
        %v529 = vunpack.c.l.b16 %v411
        %v530 = vpack.c.b16 %v499, %v498
        %v531 = vpack.c.b16 %v501, %v500
        %v532 = vpack.c.b16 %v503, %v502
        %v533 = vpack.c.b16 %v505, %v504
        %v534 = vpack.c.b16 %v507, %v506
        %v535 = vpack.c.b16 %v509, %v508
        %v536 = vpack.c.b16 %v511, %v510
        %v537 = vpack.c.b16 %v513, %v512
        %v538 = vpack.c.b16 %v515, %v514
        %v539 = vpack.c.b16 %v517, %v516
        %v540 = vpack.c.b16 %v519, %v518
        %v541 = vpack.c.b16 %v521, %v520
        %v542 = vpack.c.b16 %v523, %v522
        %v543 = vpack.c.b16 %v525, %v524
        %v544 = vpack.c.b16 %v527, %v526
        %v545 = vpack.c.b16 %v529, %v528
        %v550 = vunpack.c.l.b16 %v412
        %v551 = vunpack.c.l.b16 %v413
        %v552 = vunpack.c.l.b16 %v414
        %v553 = vunpack.c.l.b16 %v415
        %v554 = vpack.c.b16 %v551, %v550
        %v555 = vpack.c.b16 %v553, %v552
        %556 = vrot.lane.b32.xlu0 %v532, 16
        %v557 = vpop.permute.xlu0 %556
        %558 = vrot.lane.b32.xlu0 %v533, 16
        %v559 = vpop.permute.xlu0 %558
        %560 = vrot.lane.b32.xlu0 %v534, 16
        %v561 = vpop.permute.xlu0 %560
        %562 = vrot.lane.b32.xlu0 %v535, 16
        %v563 = vpop.permute.xlu0 %562
        %564 = vrot.lane.b32.xlu0 %v536, 16
        %v565 = vpop.permute.xlu0 %564
        %566 = vrot.lane.b32.xlu0 %v537, 16
        %v567 = vpop.permute.xlu0 %566
        %568 = vrot.lane.b32.xlu0 %v538, 16
        %v569 = vpop.permute.xlu0 %568
        %570 = vrot.lane.b32.xlu0 %v539, 16
        %v571 = vpop.permute.xlu0 %570
        %572 = vrot.lane.b32.xlu0 %v540, 16
        %v573 = vpop.permute.xlu0 %572
        %574 = vrot.lane.b32.xlu0 %v541, 16
        %v575 = vpop.permute.xlu0 %574
        %576 = vrot.lane.b32.xlu0 %v542, 16
        %v577 = vpop.permute.xlu0 %576
        %578 = vrot.lane.b32.xlu0 %v543, 16
        %v579 = vpop.permute.xlu0 %578
        %580 = vrot.lane.b32.xlu0 %v544, 16
        %v581 = vpop.permute.xlu0 %580
        %582 = vrot.lane.b32.xlu0 %v545, 16
        %v583 = vpop.permute.xlu0 %582
        %584 = vrot.lane.b32.xlu0 %v554, 16
        %v585 = vpop.permute.xlu0 %584
        %586 = vrot.lane.b32.xlu0 %v555, 16
        %v587 = vpop.permute.xlu0 %586
        %v592 = vunpack.c.l.b16 %v462
        %v593 = vunpack.c.l.b16 %v463
        %v594 = vunpack.c.l.b16 %v464
        %v595 = vunpack.c.l.b16 %v465
        %v596 = vpack.c.b16 %v593, %v592
        %v597 = vpack.c.b16 %v595, %v594
        %598 = vrot.lane.b32.xlu0 %v534, 32
        %v599 = vpop.permute.xlu0 %598
        %600 = vrot.lane.b32.xlu0 %v535, 32
        %v601 = vpop.permute.xlu0 %600
        %602 = vrot.lane.b32.xlu0 %v536, 32
        %v603 = vpop.permute.xlu0 %602
        %604 = vrot.lane.b32.xlu0 %v537, 32
        %v605 = vpop.permute.xlu0 %604
        %606 = vrot.lane.b32.xlu0 %v538, 32
        %v607 = vpop.permute.xlu0 %606
        %608 = vrot.lane.b32.xlu0 %v539, 32
        %v609 = vpop.permute.xlu0 %608
        %610 = vrot.lane.b32.xlu0 %v540, 32
        %v611 = vpop.permute.xlu0 %610
        %612 = vrot.lane.b32.xlu0 %v541, 32
        %v613 = vpop.permute.xlu0 %612
        %614 = vrot.lane.b32.xlu0 %v542, 32
        %v615 = vpop.permute.xlu0 %614
        %616 = vrot.lane.b32.xlu0 %v543, 32
        %v617 = vpop.permute.xlu0 %616
        %618 = vrot.lane.b32.xlu0 %v544, 32
        %v619 = vpop.permute.xlu0 %618
        %620 = vrot.lane.b32.xlu0 %v545, 32
        %v621 = vpop.permute.xlu0 %620
        %622 = vrot.lane.b32.xlu0 %v554, 32
        %v623 = vpop.permute.xlu0 %622
        %624 = vrot.lane.b32.xlu0 %v555, 32
        %v625 = vpop.permute.xlu0 %624
        %626 = vrot.lane.b32.xlu0 %v596, 32
        %v627 = vpop.permute.xlu0 %626
        %628 = vrot.lane.b32.xlu0 %v597, 32
        %v629 = vpop.permute.xlu0 %628
        %vm630 = vcmask 130048
        %v633 = vsel %vm630, %v530, %v557
        %v636 = vsel %vm630, %v531, %v559
        %v639 = vsel %vm630, %v532, %v561
        %v642 = vsel %vm630, %v533, %v563
        %v645 = vsel %vm630, %v534, %v565
        %v648 = vsel %vm630, %v535, %v567
        %v651 = vsel %vm630, %v536, %v569
        %v654 = vsel %vm630, %v537, %v571
        %v657 = vsel %vm630, %v538, %v573
        %v660 = vsel %vm630, %v539, %v575
        %v663 = vsel %vm630, %v540, %v577
        %v666 = vsel %vm630, %v541, %v579
        %v669 = vsel %vm630, %v542, %v581
        %v672 = vsel %vm630, %v543, %v583
        %v675 = vsel %vm630, %v544, %v585
        %v678 = vsel %vm630, %v545, %v587
        %vm679 = vcmask 261120
        %v681 = vsel %vm679, %v633, %v599
        %v684 = vsel %vm679, %v636, %v601
        %v686 = vsel %vm679, %v639, %v603
        %v688 = vsel %vm679, %v642, %v605
        %v690 = vsel %vm679, %v645, %v607
        %v692 = vsel %vm679, %v648, %v609
        %v694 = vsel %vm679, %v651, %v611
        %v696 = vsel %vm679, %v654, %v613
        %v698 = vsel %vm679, %v657, %v615
        %v700 = vsel %vm679, %v660, %v617
        %v702 = vsel %vm679, %v663, %v619
        %v704 = vsel %vm679, %v666, %v621
        %v706 = vsel %vm679, %v669, %v623
        %v708 = vsel %vm679, %v672, %v625
        %v710 = vsel %vm679, %v675, %v627
        %v712 = vsel %vm679, %v678, %v629
        %v714 = vlaneseq
        %v715 = vshrl.u32 %v714, 7
        %v716 = vadd.s32 %v715, 8
        %v717 = vadd.s32 %v715, 16
        %v718 = vadd.s32 %v715, 24
        %vm719 = vcmp.ne.s32.totalorder %v715, 0
        %vm720 = vcmp.ne.s32.totalorder %v716, 0
        %vm721 = vcmp.ne.s32.totalorder %v717, 0
        %vm722 = vcmp.ne.s32.totalorder %v718, 0
        %vm723 = vsmask.f32 256
        %v724 = vshrl.u32 %v681, 16
        %v726 = vrot.slane %v724, 7
        %v727 = vshll.u32 %v681, 16
        %v729 = vor.u32 %v726, %v727
        %v730 = vshrl.u32 %v684, 16
        %v732 = vrot.slane %v730, 7
        %v733 = vshll.u32 %v684, 16
        %v735 = vor.u32 %v732, %v733
        %v736 = vsel %vm723, %v726, %v735
        %v737 = vshrl.u32 %v686, 16
        %v739 = vrot.slane %v737, 7
        %v740 = vshll.u32 %v686, 16
        %v742 = vor.u32 %v739, %v740
        %v743 = vsel %vm723, %v732, %v742
        %v744 = vshrl.u32 %v688, 16
        %v746 = vrot.slane %v744, 7
        %v747 = vshll.u32 %v688, 16
        %v749 = vor.u32 %v746, %v747
        %v750 = vsel %vm723, %v739, %v749
        %v751 = vshrl.u32 %v690, 16
        %v753 = vrot.slane %v751, 7
        %v754 = vshll.u32 %v690, 16
        %v756 = vor.u32 %v753, %v754
        %v757 = vsel %vm723, %v746, %v756
        %v758 = vshrl.u32 %v692, 16
        %v760 = vrot.slane %v758, 7
        %v761 = vshll.u32 %v692, 16
        %v763 = vor.u32 %v760, %v761
        %v764 = vsel %vm723, %v753, %v763
        %v765 = vshrl.u32 %v694, 16
        %v767 = vrot.slane %v765, 7
        %v768 = vshll.u32 %v694, 16
        %v770 = vor.u32 %v767, %v768
        %v771 = vsel %vm723, %v760, %v770
        %v772 = vshrl.u32 %v696, 16
        %v774 = vrot.slane %v772, 7
        %v775 = vshll.u32 %v696, 16
        %v777 = vor.u32 %v774, %v775
        %v778 = vsel %vm723, %v767, %v777
        %v779 = vshrl.u32 %v698, 16
        %v781 = vrot.slane %v779, 7
        %v782 = vshll.u32 %v698, 16
        %v784 = vor.u32 %v781, %v782
        %v785 = vsel %vm723, %v774, %v784
        %v786 = vshrl.u32 %v700, 16
        %v788 = vrot.slane %v786, 7
        %v789 = vshll.u32 %v700, 16
        %v791 = vor.u32 %v788, %v789
        %v792 = vsel %vm723, %v781, %v791
        %v793 = vshrl.u32 %v702, 16
        %v795 = vrot.slane %v793, 7
        %v796 = vshll.u32 %v702, 16
        %v798 = vor.u32 %v795, %v796
        %v799 = vsel %vm723, %v788, %v798
        %v800 = vshrl.u32 %v704, 16
        %v802 = vrot.slane %v800, 7
        %v803 = vshll.u32 %v704, 16
        %v805 = vor.u32 %v802, %v803
        %v806 = vsel %vm723, %v795, %v805
        %v807 = vshrl.u32 %v706, 16
        %v809 = vrot.slane %v807, 7
        %v810 = vshll.u32 %v706, 16
        %v812 = vor.u32 %v809, %v810
        %v813 = vsel %vm723, %v802, %v812
        %v814 = vshrl.u32 %v708, 16
        %v816 = vrot.slane %v814, 7
        %v817 = vshll.u32 %v708, 16
        %v819 = vor.u32 %v816, %v817
        %v820 = vsel %vm723, %v809, %v819
        %v821 = vshrl.u32 %v710, 16
        %v823 = vrot.slane %v821, 7
        %v824 = vshll.u32 %v710, 16
        %v826 = vor.u32 %v823, %v824
        %v827 = vsel %vm723, %v816, %v826
        %v828 = vshrl.u32 %v712, 16
        %v830 = vrot.slane %v828, 7
        %v831 = vshll.u32 %v712, 16
        %v833 = vor.u32 %v830, %v831
        %v834 = vsel %vm723, %v823, %v833
        %vm851 = vcmask 1040384
        %vm852 = vmand %vm851, %vm723
        %v853 = vsel %vm852, %v681, %v729
        %v854 = vsel %vm719, 1, 0
        %v855 = vsel %vm720, 1, 0
        %v856 = vsel %vm721, 1, 0
        %v857 = vsel %vm722, 1, 0
        %vm858 = vcmp.eq.s32.totalorder %v854, 1
        %vm859 = vcmp.eq.s32.totalorder %v855, 1
        %vm860 = vcmp.eq.s32.totalorder %v856, 1
        %vm861 = vcmp.eq.s32.totalorder %v857, 1
        %vm862 = vmpackc.low %vm858, %vm858
        %vm863 = vmpackc.low %vm859, %vm859
        %vm864 = vmpackc.low %vm860, %vm860
        %vm865 = vmpackc.low %vm861, %vm861
        %v866 = vsel %vm862, 65537, 0
        %v867 = vsel %vm863, 65537, 0
        %v868 = vsel %vm864, 65537, 0
        %v869 = vsel %vm865, 65537, 0
        %v870 = vunpack.c.l.b16 %v866
        %v871 = vunpack.c.l.b16 %v867
        %v872 = vunpack.c.l.b16 %v868
        %v873 = vunpack.c.l.b16 %v869
        %v874 = vpack.c.b16 %v871, %v870
        %v875 = vpack.c.b16 %v873, %v872
        %vm876 = vcmp.ne.s16.totalorder %v874, 0
        %vm877 = vcmp.ne.s16.totalorder %v875, 0
        %v878 = vsel %vm876, %v853, 0
        %v879 = vsel %vm877, %v736, 0
        %v880 = vsel %vm876, %v743, 0
        %v881 = vsel %vm877, %v750, 0
        %v882 = vsel %vm876, %v757, 0
        %v883 = vsel %vm877, %v764, 0
        %v884 = vsel %vm876, %v771, 0
        %v885 = vsel %vm877, %v778, 0
        %v886 = vsel %vm876, %v785, 0
        %v887 = vsel %vm877, %v792, 0
        %v888 = vsel %vm876, %v799, 0
        %v889 = vsel %vm877, %v806, 0
        %v890 = vsel %vm876, %v813, 0
        %v891 = vsel %vm877, %v820, 0
        %v892 = vsel %vm876, %v827, 0
        %v893 = vsel %vm877, %v834, 0
        %vm894 = vcmp.ne.s32.totalorder %v715, 31
        %vm895 = vcmp.ne.s32.totalorder %v716, 31
        %vm896 = vcmp.ne.s32.totalorder %v717, 31
        %vm897 = vcmp.ne.s32.totalorder %v718, 31
        %vm898 = vsmask.f32 7424
        %v899 = vrot.slane %v727, 1
        %v900 = vor.u32 %v724, %v899
        %v901 = vrot.slane %v733, 1
        %v902 = vsel %vm898, %v900, %v901
        %v903 = vor.u32 %v730, %v901
        %v904 = vrot.slane %v740, 1
        %v905 = vsel %vm898, %v903, %v904
        %v906 = vor.u32 %v737, %v904
        %v907 = vrot.slane %v747, 1
        %v908 = vsel %vm898, %v906, %v907
        %v909 = vor.u32 %v744, %v907
        %v910 = vrot.slane %v754, 1
        %v911 = vsel %vm898, %v909, %v910
        %v912 = vor.u32 %v751, %v910
        %v913 = vrot.slane %v761, 1
        %v914 = vsel %vm898, %v912, %v913
        %v915 = vor.u32 %v758, %v913
        %v916 = vrot.slane %v768, 1
        %v917 = vsel %vm898, %v915, %v916
        %v918 = vor.u32 %v765, %v916
        %v919 = vrot.slane %v775, 1
        %v920 = vsel %vm898, %v918, %v919
        %v921 = vor.u32 %v772, %v919
        %v922 = vrot.slane %v782, 1
        %v923 = vsel %vm898, %v921, %v922
        %v924 = vor.u32 %v779, %v922
        %v925 = vrot.slane %v789, 1
        %v926 = vsel %vm898, %v924, %v925
        %v927 = vor.u32 %v786, %v925
        %v928 = vrot.slane %v796, 1
        %v929 = vsel %vm898, %v927, %v928
        %v930 = vor.u32 %v793, %v928
        %v931 = vrot.slane %v803, 1
        %v932 = vsel %vm898, %v930, %v931
        %v933 = vor.u32 %v800, %v931
        %v934 = vrot.slane %v810, 1
        %v935 = vsel %vm898, %v933, %v934
        %v936 = vor.u32 %v807, %v934
        %v937 = vrot.slane %v817, 1
        %v938 = vsel %vm898, %v936, %v937
        %v939 = vor.u32 %v814, %v937
        %v940 = vrot.slane %v824, 1
        %v941 = vsel %vm898, %v939, %v940
        %v942 = vor.u32 %v821, %v940
        %v943 = vrot.slane %v831, 1
        %v944 = vsel %vm898, %v942, %v943
        %v945 = vor.u32 %v828, %v943
        %vm962 = vcmask 1047552
        %vm963 = vmand %vm962, %vm898
        %v964 = vsel %vm963, %v945, %v712
        %v965 = vsel %vm894, 1, 0
        %v966 = vsel %vm895, 1, 0
        %v967 = vsel %vm896, 1, 0
        %v968 = vsel %vm897, 1, 0
        %vm969 = vcmp.eq.s32.totalorder %v965, 1
        %vm970 = vcmp.eq.s32.totalorder %v966, 1
        %vm971 = vcmp.eq.s32.totalorder %v967, 1
        %vm972 = vcmp.eq.s32.totalorder %v968, 1
        %vm973 = vmpackc.low %vm969, %vm969
        %vm974 = vmpackc.low %vm970, %vm970
        %vm975 = vmpackc.low %vm971, %vm971
        %vm976 = vmpackc.low %vm972, %vm972
        %v977 = vsel %vm973, 65537, 0
        %v978 = vsel %vm974, 65537, 0
        %v979 = vsel %vm975, 65537, 0
        %v980 = vsel %vm976, 65537, 0
        %v981 = vunpack.c.l.b16 %v977
        %v982 = vunpack.c.l.b16 %v978
        %v983 = vunpack.c.l.b16 %v979
        %v984 = vunpack.c.l.b16 %v980
        %v985 = vpack.c.b16 %v982, %v981
        %v986 = vpack.c.b16 %v984, %v983
        %vm987 = vcmp.ne.s16.totalorder %v985, 0
        %vm988 = vcmp.ne.s16.totalorder %v986, 0
        %v989 = vsel %vm987, %v902, 0
        %v990 = vsel %vm988, %v905, 0
        %v991 = vsel %vm987, %v908, 0
        %v992 = vsel %vm988, %v911, 0
        %v993 = vsel %vm987, %v914, 0
        %v994 = vsel %vm988, %v917, 0
        %v995 = vsel %vm987, %v920, 0
        %v996 = vsel %vm988, %v923, 0
        %v997 = vsel %vm987, %v926, 0
        %v998 = vsel %vm988, %v929, 0
        %v999 = vsel %vm987, %v932, 0
        %v1000 = vsel %vm988, %v935, 0
        %v1001 = vsel %vm987, %v938, 0
        %v1002 = vsel %vm988, %v941, 0
        %v1003 = vsel %vm987, %v944, 0
        %v1004 = vsel %vm988, %v964, 0
        %v1005 = vld [vmem:[%s3] sm:$0xf]
        %v1006 = vld [vmem:[%s3 + $0x4] sm:$0xf]
        %v1007 = vld [vmem:[%s3 + $0x8] sm:$0xf]
        %v1008 = vld [vmem:[%s3 + $0xc] sm:$0xf]
        %v1009 = vld [vmem:[%s3 + $0x10] sm:$0xf]
        %v1010 = vld [vmem:[%s3 + $0x14] sm:$0xf]
        %s1011 = scalar_lea.vmem %s3, 24
        %v1012 = vld [vmem:[%s1011] sm:$0xf]
        %v1013 = vld [vmem:[%s1011 + $0x4] sm:$0xf]
        %v1014 = vld [vmem:[%s1011 + $0x8] sm:$0xf]
        %v1015 = vld [vmem:[%s1011 + $0xc] sm:$0xf]
        %v1016 = vld [vmem:[%s1011 + $0x10] sm:$0xf]
        %v1017 = vld [vmem:[%s1011 + $0x14] sm:$0xf]
        %v1024 = vunpack.c.l.b16 %v1012
        %v1025 = vunpack.c.l.b16 %v1013
        %v1026 = vunpack.c.l.b16 %v1014
        %v1027 = vunpack.c.l.b16 %v1015
        %v1028 = vunpack.c.l.b16 %v1016
        %v1029 = vunpack.c.l.b16 %v1017
        %v1030 = vpack.c.b16 %v1025, %v1024
        %v1031 = vpack.c.b16 %v1027, %v1026
        %v1032 = vpack.c.b16 %v1029, %v1028
        %vm1036 = vcmask 392192
        %v1037 = vsel %vm1036, %v681, 0
        %v1039 = vsel %vm1036, %v684, 0
        %v1041 = vsel %vm1036, %v686, 0
        %v1043 = vsel %vm1036, %v688, 0
        %v1045 = vsel %vm1036, %v690, 0
        %v1047 = vsel %vm1036, %v692, 0
        %v1049 = vsel %vm1036, %v694, 0
        %v1051 = vsel %vm1036, %v696, 0
        %v1053 = vsel %vm1036, %v698, 0
        %v1055 = vsel %vm1036, %v700, 0
        %v1057 = vsel %vm1036, %v702, 0
        %v1059 = vsel %vm1036, %v704, 0
        %v1061 = vsel %vm1036, %v706, 0
        %v1063 = vsel %vm1036, %v708, 0
        %v1065 = vsel %vm1036, %v710, 0
        %v1067 = vsel %vm1036, %v712, 0
        %1069 = vmatprep.subr.bf16.mxu0 0
        %1070 = vmatpush1.bf16.msra.mxu0 0
        %1071 = vmatprep.subr.bf16.mxu0 0
        %1072 = vmatpush1.bf16.msra.mxu0 0
        %1073 = vmatprep.subr.bf16.mxu0 0
        %1074 = vmatpush1.bf16.msra.mxu0 0
        %1075 = vmatprep.subr.bf16.mxu0 0
        %1076 = vmatpush1.bf16.msra.mxu0 0
        %1077 = vmatprep.subr.bf16.mxu0 0
        %1078 = vmatpush1.bf16.msra.mxu0 0
        %1079 = vmatprep.subr.bf16.mxu0 0
        %1080 = vmatpush1.bf16.msra.mxu0 %v1032
        %1081 = vmatprep.subr.bf16.mxu0 0
        %1082 = vmatpush1.bf16.msra.mxu0 %v1031
        %1083 = vmatprep.subr.bf16.mxu0 0
        %1084 = vmatpush1.bf16.msra.mxu0 %v1030
        %1085 = vmatprep.subr.bf16.mxu0 0
        %1086 = vmatpush2.bf16.msra.mxu0 0
        %1087 = vmatprep.subr.bf16.mxu0 0
        %1088 = vmatpush2.bf16.msra.mxu0 0
        %1089 = vmatprep.subr.bf16.mxu0 0
        %1090 = vmatpush2.bf16.msra.mxu0 0
        %1091 = vmatprep.subr.bf16.mxu0 0
        %1092 = vmatpush2.bf16.msra.mxu0 0
        %1093 = vmatprep.subr.bf16.mxu0 0
        %1094 = vmatpush2.bf16.msra.mxu0 0
        %1095 = vmatprep.subr.bf16.mxu0 0
        %1096 = vmatpush2.bf16.msra.mxu0 0
        %1097 = vmatprep.subr.bf16.mxu0 0
        %1098 = vmatpush2.bf16.msra.mxu0 0
        %1099 = vmatprep.subr.bf16.mxu0 0
        %1100 = vmatpush2.bf16.msra.mxu0 0
        %1101 = vmatprep.mubr.bf16.mxu0 0
        %1102 = vmatmul.mubr.bf16.gmra.mxu0 %v1037
        %v1103 = vpop.f32.mrf.mxu0
        %v1104 = vadd.f32 0.0, %v1103
        %v1105 = vpop.f32.mrf.mxu0
        %v1106 = vpop.f32.mrf.mxu0
        %v1107 = vadd.f32 0.0, %v1106
        %v1108 = vpop.f32.mrf.mxu0
        %1109 = vmatprep.mubr.bf16.mxu0 0
        %1110 = vmatmul.mubr.bf16.gmra.mxu0 %v1039
        %v1111 = vpop.f32.mrf.mxu0
        %v1112 = vadd.f32 0.0, %v1111
        %v1113 = vpop.f32.mrf.mxu0
        %v1114 = vpop.f32.mrf.mxu0
        %v1115 = vadd.f32 0.0, %v1114
        %v1116 = vpop.f32.mrf.mxu0
        %1117 = vmatprep.mubr.bf16.mxu0 0
        %1118 = vmatmul.mubr.bf16.gmra.mxu0 %v1041
        %v1119 = vpop.f32.mrf.mxu0
        %v1120 = vadd.f32 0.0, %v1119
        %v1121 = vpop.f32.mrf.mxu0
        %v1122 = vpop.f32.mrf.mxu0
        %v1123 = vadd.f32 0.0, %v1122
        %v1124 = vpop.f32.mrf.mxu0
        %1125 = vmatprep.mubr.bf16.mxu0 0
        %1126 = vmatmul.mubr.bf16.gmra.mxu0 %v1043
        %v1127 = vpop.f32.mrf.mxu0
        %v1128 = vadd.f32 0.0, %v1127
        %v1129 = vpop.f32.mrf.mxu0
        %v1130 = vpop.f32.mrf.mxu0
        %v1131 = vadd.f32 0.0, %v1130
        %v1132 = vpop.f32.mrf.mxu0
        %1133 = vmatprep.mubr.bf16.mxu0 0
        %1134 = vmatmul.mubr.bf16.gmra.mxu0 %v1045
        %v1135 = vpop.f32.mrf.mxu0
        %v1136 = vadd.f32 0.0, %v1135
        %v1137 = vpop.f32.mrf.mxu0
        %v1138 = vpop.f32.mrf.mxu0
        %v1139 = vadd.f32 0.0, %v1138
        %v1140 = vpop.f32.mrf.mxu0
        %1141 = vmatprep.mubr.bf16.mxu0 0
        %1142 = vmatmul.mubr.bf16.gmra.mxu0 %v1047
        %v1143 = vpop.f32.mrf.mxu0
        %v1144 = vadd.f32 0.0, %v1143
        %v1145 = vpop.f32.mrf.mxu0
        %v1146 = vpop.f32.mrf.mxu0
        %v1147 = vadd.f32 0.0, %v1146
        %v1148 = vpop.f32.mrf.mxu0
        %1149 = vmatprep.mubr.bf16.mxu0 0
        %1150 = vmatmul.mubr.bf16.gmra.mxu0 %v1049
        %v1151 = vpop.f32.mrf.mxu0
        %v1152 = vadd.f32 0.0, %v1151
        %v1153 = vpop.f32.mrf.mxu0
        %v1154 = vpop.f32.mrf.mxu0
        %v1155 = vadd.f32 0.0, %v1154
        %v1156 = vpop.f32.mrf.mxu0
        %1157 = vmatprep.mubr.bf16.mxu0 0
        %1158 = vmatmul.mubr.bf16.gmra.mxu0 %v1051
        %v1159 = vpop.f32.mrf.mxu0
        %v1160 = vadd.f32 0.0, %v1159
        %v1161 = vpop.f32.mrf.mxu0
        %v1162 = vpop.f32.mrf.mxu0
        %v1163 = vadd.f32 0.0, %v1162
        %v1164 = vpop.f32.mrf.mxu0
        %1165 = vmatprep.mubr.bf16.mxu0 0
        %1166 = vmatmul.mubr.bf16.gmra.mxu0 %v1053
        %v1167 = vpop.f32.mrf.mxu0
        %v1168 = vadd.f32 0.0, %v1167
        %v1169 = vpop.f32.mrf.mxu0
        %v1170 = vpop.f32.mrf.mxu0
        %v1171 = vadd.f32 0.0, %v1170
        %v1172 = vpop.f32.mrf.mxu0
        %1173 = vmatprep.mubr.bf16.mxu0 0
        %1174 = vmatmul.mubr.bf16.gmra.mxu0 %v1055
        %v1175 = vpop.f32.mrf.mxu0
        %v1176 = vadd.f32 0.0, %v1175
        %v1177 = vpop.f32.mrf.mxu0
        %v1178 = vpop.f32.mrf.mxu0
        %v1179 = vadd.f32 0.0, %v1178
        %v1180 = vpop.f32.mrf.mxu0
        %1181 = vmatprep.mubr.bf16.mxu0 0
        %1182 = vmatmul.mubr.bf16.gmra.mxu0 %v1057
        %v1183 = vpop.f32.mrf.mxu0
        %v1184 = vadd.f32 0.0, %v1183
        %v1185 = vpop.f32.mrf.mxu0
        %v1186 = vpop.f32.mrf.mxu0
        %v1187 = vadd.f32 0.0, %v1186
        %v1188 = vpop.f32.mrf.mxu0
        %1189 = vmatprep.mubr.bf16.mxu0 0
        %1190 = vmatmul.mubr.bf16.gmra.mxu0 %v1059
        %v1191 = vpop.f32.mrf.mxu0
        %v1192 = vadd.f32 0.0, %v1191
        %v1193 = vpop.f32.mrf.mxu0
        %v1194 = vpop.f32.mrf.mxu0
        %v1195 = vadd.f32 0.0, %v1194
        %v1196 = vpop.f32.mrf.mxu0
        %1197 = vmatprep.mubr.bf16.mxu0 0
        %1198 = vmatmul.mubr.bf16.gmra.mxu0 %v1061
        %v1199 = vpop.f32.mrf.mxu0
        %v1200 = vadd.f32 0.0, %v1199
        %v1201 = vpop.f32.mrf.mxu0
        %v1202 = vpop.f32.mrf.mxu0
        %v1203 = vadd.f32 0.0, %v1202
        %v1204 = vpop.f32.mrf.mxu0
        %1205 = vmatprep.mubr.bf16.mxu0 0
        %1206 = vmatmul.mubr.bf16.gmra.mxu0 %v1063
        %v1207 = vpop.f32.mrf.mxu0
        %v1208 = vadd.f32 0.0, %v1207
        %v1209 = vpop.f32.mrf.mxu0
        %v1210 = vpop.f32.mrf.mxu0
        %v1211 = vadd.f32 0.0, %v1210
        %v1212 = vpop.f32.mrf.mxu0
        %1213 = vmatprep.mubr.bf16.mxu0 0
        %1214 = vmatmul.mubr.bf16.gmra.mxu0 %v1065
        %v1215 = vpop.f32.mrf.mxu0
        %v1216 = vadd.f32 0.0, %v1215
        %v1217 = vpop.f32.mrf.mxu0
        %v1218 = vpop.f32.mrf.mxu0
        %v1219 = vadd.f32 0.0, %v1218
        %v1220 = vpop.f32.mrf.mxu0
        %1221 = vmatprep.mubr.bf16.mxu0 0
        %1222 = vmatmul.mubr.bf16.gmra.mxu0 %v1067
        %v1223 = vpop.f32.mrf.mxu0
        %v1224 = vadd.f32 0.0, %v1223
        %v1225 = vpop.f32.mrf.mxu0
        %v1226 = vpop.f32.mrf.mxu0
        %v1227 = vadd.f32 0.0, %v1226
        %v1228 = vpop.f32.mrf.mxu0
        %1229 = vdwg.mxu0
        %v1236 = vunpack.c.l.b16 %v1005
        %v1237 = vunpack.c.l.b16 %v1006
        %v1238 = vunpack.c.l.b16 %v1007
        %v1239 = vunpack.c.l.b16 %v1008
        %v1240 = vunpack.c.l.b16 %v1009
        %v1241 = vunpack.c.l.b16 %v1010
        %v1242 = vpack.c.b16 %v1237, %v1236
        %v1243 = vpack.c.b16 %v1239, %v1238
        %v1244 = vpack.c.b16 %v1241, %v1240
        %v1249 = vsel %vm1036, %v878, 0
        %v1252 = vsel %vm1036, %v879, 0
        %v1255 = vsel %vm1036, %v880, 0
        %v1258 = vsel %vm1036, %v881, 0
        %v1261 = vsel %vm1036, %v882, 0
        %v1264 = vsel %vm1036, %v883, 0
        %v1267 = vsel %vm1036, %v884, 0
        %v1270 = vsel %vm1036, %v885, 0
        %v1273 = vsel %vm1036, %v886, 0
        %v1276 = vsel %vm1036, %v887, 0
        %v1279 = vsel %vm1036, %v888, 0
        %v1282 = vsel %vm1036, %v889, 0
        %v1285 = vsel %vm1036, %v890, 0
        %v1288 = vsel %vm1036, %v891, 0
        %v1291 = vsel %vm1036, %v892, 0
        %v1294 = vsel %vm1036, %v893, 0
        %1296 = vmatprep.subr.bf16.mxu0 0
        %1297 = vmatpush1.bf16.msra.mxu0 0
        %1298 = vmatprep.subr.bf16.mxu0 0
        %1299 = vmatpush1.bf16.msra.mxu0 0
        %1300 = vmatprep.subr.bf16.mxu0 0
        %1301 = vmatpush1.bf16.msra.mxu0 0
        %1302 = vmatprep.subr.bf16.mxu0 0
        %1303 = vmatpush1.bf16.msra.mxu0 0
        %1304 = vmatprep.subr.bf16.mxu0 0
        %1305 = vmatpush1.bf16.msra.mxu0 0
        %1306 = vmatprep.subr.bf16.mxu0 0
        %1307 = vmatpush1.bf16.msra.mxu0 %v1244
        %1308 = vmatprep.subr.bf16.mxu0 0
        %1309 = vmatpush1.bf16.msra.mxu0 %v1243
        %1310 = vmatprep.subr.bf16.mxu0 0
        %1311 = vmatpush1.bf16.msra.mxu0 %v1242
        %1312 = vmatprep.subr.bf16.mxu0 0
        %1313 = vmatpush2.bf16.msra.mxu0 0
        %1314 = vmatprep.subr.bf16.mxu0 0
        %1315 = vmatpush2.bf16.msra.mxu0 0
        %1316 = vmatprep.subr.bf16.mxu0 0
        %1317 = vmatpush2.bf16.msra.mxu0 0
        %1318 = vmatprep.subr.bf16.mxu0 0
        %1319 = vmatpush2.bf16.msra.mxu0 0
        %1320 = vmatprep.subr.bf16.mxu0 0
        %1321 = vmatpush2.bf16.msra.mxu0 0
        %1322 = vmatprep.subr.bf16.mxu0 0
        %1323 = vmatpush2.bf16.msra.mxu0 0
        %1324 = vmatprep.subr.bf16.mxu0 0
        %1325 = vmatpush2.bf16.msra.mxu0 0
        %1326 = vmatprep.subr.bf16.mxu0 0
        %1327 = vmatpush2.bf16.msra.mxu0 0
        %1328 = vmatprep.mubr.bf16.mxu0 0
        %1329 = vmatmul.mubr.bf16.gmra.mxu0 %v1249
        %v1330 = vpop.f32.mrf.mxu0
        %v1331 = vadd.f32 %v1104, %v1330
        %v1332 = vpop.f32.mrf.mxu0
        %v1333 = vpop.f32.mrf.mxu0
        %v1334 = vadd.f32 %v1107, %v1333
        %v1335 = vpop.f32.mrf.mxu0
        %1336 = vmatprep.mubr.bf16.mxu0 0
        %1337 = vmatmul.mubr.bf16.gmra.mxu0 %v1252
        %v1338 = vpop.f32.mrf.mxu0
        %v1339 = vadd.f32 %v1112, %v1338
        %v1340 = vpop.f32.mrf.mxu0
        %v1341 = vpop.f32.mrf.mxu0
        %v1342 = vadd.f32 %v1115, %v1341
        %v1343 = vpop.f32.mrf.mxu0
        %1344 = vmatprep.mubr.bf16.mxu0 0
        %1345 = vmatmul.mubr.bf16.gmra.mxu0 %v1255
        %v1346 = vpop.f32.mrf.mxu0
        %v1347 = vadd.f32 %v1120, %v1346
        %v1348 = vpop.f32.mrf.mxu0
        %v1349 = vpop.f32.mrf.mxu0
        %v1350 = vadd.f32 %v1123, %v1349
        %v1351 = vpop.f32.mrf.mxu0
        %1352 = vmatprep.mubr.bf16.mxu0 0
        %1353 = vmatmul.mubr.bf16.gmra.mxu0 %v1258
        %v1354 = vpop.f32.mrf.mxu0
        %v1355 = vadd.f32 %v1128, %v1354
        %v1356 = vpop.f32.mrf.mxu0
        %v1357 = vpop.f32.mrf.mxu0
        %v1358 = vadd.f32 %v1131, %v1357
        %v1359 = vpop.f32.mrf.mxu0
        %1360 = vmatprep.mubr.bf16.mxu0 0
        %1361 = vmatmul.mubr.bf16.gmra.mxu0 %v1261
        %v1362 = vpop.f32.mrf.mxu0
        %v1363 = vadd.f32 %v1136, %v1362
        %v1364 = vpop.f32.mrf.mxu0
        %v1365 = vpop.f32.mrf.mxu0
        %v1366 = vadd.f32 %v1139, %v1365
        %v1367 = vpop.f32.mrf.mxu0
        %1368 = vmatprep.mubr.bf16.mxu0 0
        %1369 = vmatmul.mubr.bf16.gmra.mxu0 %v1264
        %v1370 = vpop.f32.mrf.mxu0
        %v1371 = vadd.f32 %v1144, %v1370
        %v1372 = vpop.f32.mrf.mxu0
        %v1373 = vpop.f32.mrf.mxu0
        %v1374 = vadd.f32 %v1147, %v1373
        %v1375 = vpop.f32.mrf.mxu0
        %1376 = vmatprep.mubr.bf16.mxu0 0
        %1377 = vmatmul.mubr.bf16.gmra.mxu0 %v1267
        %v1378 = vpop.f32.mrf.mxu0
        %v1379 = vadd.f32 %v1152, %v1378
        %v1380 = vpop.f32.mrf.mxu0
        %v1381 = vpop.f32.mrf.mxu0
        %v1382 = vadd.f32 %v1155, %v1381
        %v1383 = vpop.f32.mrf.mxu0
        %1384 = vmatprep.mubr.bf16.mxu0 0
        %1385 = vmatmul.mubr.bf16.gmra.mxu0 %v1270
        %v1386 = vpop.f32.mrf.mxu0
        %v1387 = vadd.f32 %v1160, %v1386
        %v1388 = vpop.f32.mrf.mxu0
        %v1389 = vpop.f32.mrf.mxu0
        %v1390 = vadd.f32 %v1163, %v1389
        %v1391 = vpop.f32.mrf.mxu0
        %1392 = vmatprep.mubr.bf16.mxu0 0
        %1393 = vmatmul.mubr.bf16.gmra.mxu0 %v1273
        %v1394 = vpop.f32.mrf.mxu0
        %v1395 = vadd.f32 %v1168, %v1394
        %v1396 = vpop.f32.mrf.mxu0
        %v1397 = vpop.f32.mrf.mxu0
        %v1398 = vadd.f32 %v1171, %v1397
        %v1399 = vpop.f32.mrf.mxu0
        %1400 = vmatprep.mubr.bf16.mxu0 0
        %1401 = vmatmul.mubr.bf16.gmra.mxu0 %v1276
        %v1402 = vpop.f32.mrf.mxu0
        %v1403 = vadd.f32 %v1176, %v1402
        %v1404 = vpop.f32.mrf.mxu0
        %v1405 = vpop.f32.mrf.mxu0
        %v1406 = vadd.f32 %v1179, %v1405
        %v1407 = vpop.f32.mrf.mxu0
        %1408 = vmatprep.mubr.bf16.mxu0 0
        %1409 = vmatmul.mubr.bf16.gmra.mxu0 %v1279
        %v1410 = vpop.f32.mrf.mxu0
        %v1411 = vadd.f32 %v1184, %v1410
        %v1412 = vpop.f32.mrf.mxu0
        %v1413 = vpop.f32.mrf.mxu0
        %v1414 = vadd.f32 %v1187, %v1413
        %v1415 = vpop.f32.mrf.mxu0
        %1416 = vmatprep.mubr.bf16.mxu0 0
        %1417 = vmatmul.mubr.bf16.gmra.mxu0 %v1282
        %v1418 = vpop.f32.mrf.mxu0
        %v1419 = vadd.f32 %v1192, %v1418
        %v1420 = vpop.f32.mrf.mxu0
        %v1421 = vpop.f32.mrf.mxu0
        %v1422 = vadd.f32 %v1195, %v1421
        %v1423 = vpop.f32.mrf.mxu0
        %1424 = vmatprep.mubr.bf16.mxu0 0
        %1425 = vmatmul.mubr.bf16.gmra.mxu0 %v1285
        %v1426 = vpop.f32.mrf.mxu0
        %v1427 = vadd.f32 %v1200, %v1426
        %v1428 = vpop.f32.mrf.mxu0
        %v1429 = vpop.f32.mrf.mxu0
        %v1430 = vadd.f32 %v1203, %v1429
        %v1431 = vpop.f32.mrf.mxu0
        %1432 = vmatprep.mubr.bf16.mxu0 0
        %1433 = vmatmul.mubr.bf16.gmra.mxu0 %v1288
        %v1434 = vpop.f32.mrf.mxu0
        %v1435 = vadd.f32 %v1208, %v1434
        %v1436 = vpop.f32.mrf.mxu0
        %v1437 = vpop.f32.mrf.mxu0
        %v1438 = vadd.f32 %v1211, %v1437
        %v1439 = vpop.f32.mrf.mxu0
        %1440 = vmatprep.mubr.bf16.mxu0 0
        %1441 = vmatmul.mubr.bf16.gmra.mxu0 %v1291
        %v1442 = vpop.f32.mrf.mxu0
        %v1443 = vadd.f32 %v1216, %v1442
        %v1444 = vpop.f32.mrf.mxu0
        %v1445 = vpop.f32.mrf.mxu0
        %v1446 = vadd.f32 %v1219, %v1445
        %v1447 = vpop.f32.mrf.mxu0
        %1448 = vmatprep.mubr.bf16.mxu0 0
        %1449 = vmatmul.mubr.bf16.gmra.mxu0 %v1294
        %v1450 = vpop.f32.mrf.mxu0
        %v1451 = vadd.f32 %v1224, %v1450
        %v1452 = vpop.f32.mrf.mxu0
        %v1453 = vpop.f32.mrf.mxu0
        %v1454 = vadd.f32 %v1227, %v1453
        %v1455 = vpop.f32.mrf.mxu0
        %1456 = vdwg.mxu0
        %s1457 = scalar_lea.vmem %s3, 48
        %v1458 = vld [vmem:[%s1457] sm:$0xf]
        %v1459 = vld [vmem:[%s1457 + $0x4] sm:$0xf]
        %v1460 = vld [vmem:[%s1457 + $0x8] sm:$0xf]
        %v1461 = vld [vmem:[%s1457 + $0xc] sm:$0xf]
        %v1462 = vld [vmem:[%s1457 + $0x10] sm:$0xf]
        %v1463 = vld [vmem:[%s1457 + $0x14] sm:$0xf]
        %v1470 = vunpack.c.l.b16 %v1458
        %v1471 = vunpack.c.l.b16 %v1459
        %v1472 = vunpack.c.l.b16 %v1460
        %v1473 = vunpack.c.l.b16 %v1461
        %v1474 = vunpack.c.l.b16 %v1462
        %v1475 = vunpack.c.l.b16 %v1463
        %v1476 = vpack.c.b16 %v1471, %v1470
        %v1477 = vpack.c.b16 %v1473, %v1472
        %v1478 = vpack.c.b16 %v1475, %v1474
        %v1483 = vsel %vm1036, %v989, 0
        %v1486 = vsel %vm1036, %v990, 0
        %v1489 = vsel %vm1036, %v991, 0
        %v1492 = vsel %vm1036, %v992, 0
        %v1495 = vsel %vm1036, %v993, 0
        %v1498 = vsel %vm1036, %v994, 0
        %v1501 = vsel %vm1036, %v995, 0
        %v1504 = vsel %vm1036, %v996, 0
        %v1507 = vsel %vm1036, %v997, 0
        %v1510 = vsel %vm1036, %v998, 0
        %v1513 = vsel %vm1036, %v999, 0
        %v1516 = vsel %vm1036, %v1000, 0
        %v1519 = vsel %vm1036, %v1001, 0
        %v1522 = vsel %vm1036, %v1002, 0
        %v1525 = vsel %vm1036, %v1003, 0
        %v1528 = vsel %vm1036, %v1004, 0
        %1530 = vmatprep.subr.bf16.mxu0 0
        %1531 = vmatpush1.bf16.msra.mxu0 0
        %1532 = vmatprep.subr.bf16.mxu0 0
        %1533 = vmatpush1.bf16.msra.mxu0 0
        %1534 = vmatprep.subr.bf16.mxu0 0
        %1535 = vmatpush1.bf16.msra.mxu0 0
        %1536 = vmatprep.subr.bf16.mxu0 0
        %1537 = vmatpush1.bf16.msra.mxu0 0
        %1538 = vmatprep.subr.bf16.mxu0 0
        %1539 = vmatpush1.bf16.msra.mxu0 0
        %1540 = vmatprep.subr.bf16.mxu0 0
        %1541 = vmatpush1.bf16.msra.mxu0 %v1478
        %1542 = vmatprep.subr.bf16.mxu0 0
        %1543 = vmatpush1.bf16.msra.mxu0 %v1477
        %1544 = vmatprep.subr.bf16.mxu0 0
        %1545 = vmatpush1.bf16.msra.mxu0 %v1476
        %1546 = vmatprep.subr.bf16.mxu0 0
        %1547 = vmatpush2.bf16.msra.mxu0 0
        %1548 = vmatprep.subr.bf16.mxu0 0
        %1549 = vmatpush2.bf16.msra.mxu0 0
        %1550 = vmatprep.subr.bf16.mxu0 0
        %1551 = vmatpush2.bf16.msra.mxu0 0
        %1552 = vmatprep.subr.bf16.mxu0 0
        %1553 = vmatpush2.bf16.msra.mxu0 0
        %1554 = vmatprep.subr.bf16.mxu0 0
        %1555 = vmatpush2.bf16.msra.mxu0 0
        %1556 = vmatprep.subr.bf16.mxu0 0
        %1557 = vmatpush2.bf16.msra.mxu0 0
        %1558 = vmatprep.subr.bf16.mxu0 0
        %1559 = vmatpush2.bf16.msra.mxu0 0
        %1560 = vmatprep.subr.bf16.mxu0 0
        %1561 = vmatpush2.bf16.msra.mxu0 0
        %1562 = vmatprep.mubr.bf16.mxu0 0
        %1563 = vmatmul.mubr.bf16.gmra.mxu0 %v1483
        %v1564 = vpop.f32.mrf.mxu0
        %v1565 = vadd.f32 0.0, %v1564
        %v1566 = vpop.f32.mrf.mxu0
        %v1567 = vpop.f32.mrf.mxu0
        %v1568 = vadd.f32 0.0, %v1567
        %v1569 = vpop.f32.mrf.mxu0
        %1570 = vmatprep.mubr.bf16.mxu0 0
        %1571 = vmatmul.mubr.bf16.gmra.mxu0 %v1486
        %v1572 = vpop.f32.mrf.mxu0
        %v1573 = vadd.f32 0.0, %v1572
        %v1574 = vpop.f32.mrf.mxu0
        %v1575 = vpop.f32.mrf.mxu0
        %v1576 = vadd.f32 0.0, %v1575
        %v1577 = vpop.f32.mrf.mxu0
        %1578 = vmatprep.mubr.bf16.mxu0 0
        %1579 = vmatmul.mubr.bf16.gmra.mxu0 %v1489
        %v1580 = vpop.f32.mrf.mxu0
        %v1581 = vadd.f32 0.0, %v1580
        %v1582 = vpop.f32.mrf.mxu0
        %v1583 = vpop.f32.mrf.mxu0
        %v1584 = vadd.f32 0.0, %v1583
        %v1585 = vpop.f32.mrf.mxu0
        %1586 = vmatprep.mubr.bf16.mxu0 0
        %1587 = vmatmul.mubr.bf16.gmra.mxu0 %v1492
        %v1588 = vpop.f32.mrf.mxu0
        %v1589 = vadd.f32 0.0, %v1588
        %v1590 = vpop.f32.mrf.mxu0
        %v1591 = vpop.f32.mrf.mxu0
        %v1592 = vadd.f32 0.0, %v1591
        %v1593 = vpop.f32.mrf.mxu0
        %1594 = vmatprep.mubr.bf16.mxu0 0
        %1595 = vmatmul.mubr.bf16.gmra.mxu0 %v1495
        %v1596 = vpop.f32.mrf.mxu0
        %v1597 = vadd.f32 0.0, %v1596
        %v1598 = vpop.f32.mrf.mxu0
        %v1599 = vpop.f32.mrf.mxu0
        %v1600 = vadd.f32 0.0, %v1599
        %v1601 = vpop.f32.mrf.mxu0
        %1602 = vmatprep.mubr.bf16.mxu0 0
        %1603 = vmatmul.mubr.bf16.gmra.mxu0 %v1498
        %v1604 = vpop.f32.mrf.mxu0
        %v1605 = vadd.f32 0.0, %v1604
        %v1606 = vpop.f32.mrf.mxu0
        %v1607 = vpop.f32.mrf.mxu0
        %v1608 = vadd.f32 0.0, %v1607
        %v1609 = vpop.f32.mrf.mxu0
        %1610 = vmatprep.mubr.bf16.mxu0 0
        %1611 = vmatmul.mubr.bf16.gmra.mxu0 %v1501
        %v1612 = vpop.f32.mrf.mxu0
        %v1613 = vadd.f32 0.0, %v1612
        %v1614 = vpop.f32.mrf.mxu0
        %v1615 = vpop.f32.mrf.mxu0
        %v1616 = vadd.f32 0.0, %v1615
        %v1617 = vpop.f32.mrf.mxu0
        %1618 = vmatprep.mubr.bf16.mxu0 0
        %1619 = vmatmul.mubr.bf16.gmra.mxu0 %v1504
        %v1620 = vpop.f32.mrf.mxu0
        %v1621 = vadd.f32 0.0, %v1620
        %v1622 = vpop.f32.mrf.mxu0
        %v1623 = vpop.f32.mrf.mxu0
        %v1624 = vadd.f32 0.0, %v1623
        %v1625 = vpop.f32.mrf.mxu0
        %1626 = vmatprep.mubr.bf16.mxu0 0
        %1627 = vmatmul.mubr.bf16.gmra.mxu0 %v1507
        %v1628 = vpop.f32.mrf.mxu0
        %v1629 = vadd.f32 0.0, %v1628
        %v1630 = vpop.f32.mrf.mxu0
        %v1631 = vpop.f32.mrf.mxu0
        %v1632 = vadd.f32 0.0, %v1631
        %v1633 = vpop.f32.mrf.mxu0
        %1634 = vmatprep.mubr.bf16.mxu0 0
        %1635 = vmatmul.mubr.bf16.gmra.mxu0 %v1510
        %v1636 = vpop.f32.mrf.mxu0
        %v1637 = vadd.f32 0.0, %v1636
        %v1638 = vpop.f32.mrf.mxu0
        %v1639 = vpop.f32.mrf.mxu0
        %v1640 = vadd.f32 0.0, %v1639
        %v1641 = vpop.f32.mrf.mxu0
        %1642 = vmatprep.mubr.bf16.mxu0 0
        %1643 = vmatmul.mubr.bf16.gmra.mxu0 %v1513
        %v1644 = vpop.f32.mrf.mxu0
        %v1645 = vadd.f32 0.0, %v1644
        %v1646 = vpop.f32.mrf.mxu0
        %v1647 = vpop.f32.mrf.mxu0
        %v1648 = vadd.f32 0.0, %v1647
        %v1649 = vpop.f32.mrf.mxu0
        %1650 = vmatprep.mubr.bf16.mxu0 0
        %1651 = vmatmul.mubr.bf16.gmra.mxu0 %v1516
        %v1652 = vpop.f32.mrf.mxu0
        %v1653 = vadd.f32 0.0, %v1652
        %v1654 = vpop.f32.mrf.mxu0
        %v1655 = vpop.f32.mrf.mxu0
        %v1656 = vadd.f32 0.0, %v1655
        %v1657 = vpop.f32.mrf.mxu0
        %1658 = vmatprep.mubr.bf16.mxu0 0
        %1659 = vmatmul.mubr.bf16.gmra.mxu0 %v1519
        %v1660 = vpop.f32.mrf.mxu0
        %v1661 = vadd.f32 0.0, %v1660
        %v1662 = vpop.f32.mrf.mxu0
        %v1663 = vpop.f32.mrf.mxu0
        %v1664 = vadd.f32 0.0, %v1663
        %v1665 = vpop.f32.mrf.mxu0
        %1666 = vmatprep.mubr.bf16.mxu0 0
        %1667 = vmatmul.mubr.bf16.gmra.mxu0 %v1522
        %v1668 = vpop.f32.mrf.mxu0
        %v1669 = vadd.f32 0.0, %v1668
        %v1670 = vpop.f32.mrf.mxu0
        %v1671 = vpop.f32.mrf.mxu0
        %v1672 = vadd.f32 0.0, %v1671
        %v1673 = vpop.f32.mrf.mxu0
        %1674 = vmatprep.mubr.bf16.mxu0 0
        %1675 = vmatmul.mubr.bf16.gmra.mxu0 %v1525
        %v1676 = vpop.f32.mrf.mxu0
        %v1677 = vadd.f32 0.0, %v1676
        %v1678 = vpop.f32.mrf.mxu0
        %v1679 = vpop.f32.mrf.mxu0
        %v1680 = vadd.f32 0.0, %v1679
        %v1681 = vpop.f32.mrf.mxu0
        %1682 = vmatprep.mubr.bf16.mxu0 0
        %1683 = vmatmul.mubr.bf16.gmra.mxu0 %v1528
        %v1684 = vpop.f32.mrf.mxu0
        %v1685 = vadd.f32 0.0, %v1684
        %v1686 = vpop.f32.mrf.mxu0
        %v1687 = vpop.f32.mrf.mxu0
        %v1688 = vadd.f32 0.0, %v1687
        %v1689 = vpop.f32.mrf.mxu0
        %1690 = vdwg.mxu0
        %v1691 = vadd.f32 %v1331, %v1565
        %v1692 = vadd.f32 %v1334, %v1568
        %v1693 = vadd.f32 %v1339, %v1573
        %v1694 = vadd.f32 %v1342, %v1576
        %v1695 = vadd.f32 %v1347, %v1581
        %v1696 = vadd.f32 %v1350, %v1584
        %v1697 = vadd.f32 %v1355, %v1589
        %v1698 = vadd.f32 %v1358, %v1592
        %v1699 = vadd.f32 %v1363, %v1597
        %v1700 = vadd.f32 %v1366, %v1600
        %v1701 = vadd.f32 %v1371, %v1605
        %v1702 = vadd.f32 %v1374, %v1608
        %v1703 = vadd.f32 %v1379, %v1613
        %v1704 = vadd.f32 %v1382, %v1616
        %v1705 = vadd.f32 %v1387, %v1621
        %v1706 = vadd.f32 %v1390, %v1624
        %v1707 = vadd.f32 %v1395, %v1629
        %v1708 = vadd.f32 %v1398, %v1632
        %v1709 = vadd.f32 %v1403, %v1637
        %v1710 = vadd.f32 %v1406, %v1640
        %v1711 = vadd.f32 %v1411, %v1645
        %v1712 = vadd.f32 %v1414, %v1648
        %v1713 = vadd.f32 %v1419, %v1653
        %v1714 = vadd.f32 %v1422, %v1656
        %v1715 = vadd.f32 %v1427, %v1661
        %v1716 = vadd.f32 %v1430, %v1664
        %v1717 = vadd.f32 %v1435, %v1669
        %v1718 = vadd.f32 %v1438, %v1672
        %v1719 = vadd.f32 %v1443, %v1677
        %v1720 = vadd.f32 %v1446, %v1680
        %v1721 = vadd.f32 %v1451, %v1685
        %v1722 = vadd.f32 %v1454, %v1688
        %v1723 = vld [vmem:[%s4] sm:$0x1]
        %v1725 = vlaneseq
        %v1726 = vshrl.u32 %v1725, 7
        %v1727 = vsub.s32 0, %v1726
        %v1728 = vrot.slane %v1723, %v1727
        %v1730 = vadd.f32 %v1691, %v1728
        %v1731 = vadd.f32 %v1692, %v1728
        %v1732 = vadd.f32 %v1693, %v1728
        %v1733 = vadd.f32 %v1694, %v1728
        %v1734 = vadd.f32 %v1695, %v1728
        %v1735 = vadd.f32 %v1696, %v1728
        %v1736 = vadd.f32 %v1697, %v1728
        %v1737 = vadd.f32 %v1698, %v1728
        %v1738 = vadd.f32 %v1699, %v1728
        %v1739 = vadd.f32 %v1700, %v1728
        %v1740 = vadd.f32 %v1701, %v1728
        %v1741 = vadd.f32 %v1702, %v1728
        %v1742 = vadd.f32 %v1703, %v1728
        %v1743 = vadd.f32 %v1704, %v1728
        %v1744 = vadd.f32 %v1705, %v1728
        %v1745 = vadd.f32 %v1706, %v1728
        %v1746 = vadd.f32 %v1707, %v1728
        %v1747 = vadd.f32 %v1708, %v1728
        %v1748 = vadd.f32 %v1709, %v1728
        %v1749 = vadd.f32 %v1710, %v1728
        %v1750 = vadd.f32 %v1711, %v1728
        %v1751 = vadd.f32 %v1712, %v1728
        %v1752 = vadd.f32 %v1713, %v1728
        %v1753 = vadd.f32 %v1714, %v1728
        %v1754 = vadd.f32 %v1715, %v1728
        %v1755 = vadd.f32 %v1716, %v1728
        %v1756 = vadd.f32 %v1717, %v1728
        %v1757 = vadd.f32 %v1718, %v1728
        %v1758 = vadd.f32 %v1719, %v1728
        %v1759 = vadd.f32 %v1720, %v1728
        %v1760 = vadd.f32 %v1721, %v1728
        %v1761 = vadd.f32 %v1722, %v1728
        %v1762 = vmax.f32 %v1730, 0.0
        %v1763 = vmax.f32 %v1731, 0.0
        %v1764 = vmax.f32 %v1732, 0.0
        %v1765 = vmax.f32 %v1733, 0.0
        %v1766 = vmax.f32 %v1734, 0.0
        %v1767 = vmax.f32 %v1735, 0.0
        %v1768 = vmax.f32 %v1736, 0.0
        %v1769 = vmax.f32 %v1737, 0.0
        %v1770 = vmax.f32 %v1738, 0.0
        %v1771 = vmax.f32 %v1739, 0.0
        %v1772 = vmax.f32 %v1740, 0.0
        %v1773 = vmax.f32 %v1741, 0.0
        %v1774 = vmax.f32 %v1742, 0.0
        %v1775 = vmax.f32 %v1743, 0.0
        %v1776 = vmax.f32 %v1744, 0.0
        %v1777 = vmax.f32 %v1745, 0.0
        %v1778 = vmax.f32 %v1746, 0.0
        %v1779 = vmax.f32 %v1747, 0.0
        %v1780 = vmax.f32 %v1748, 0.0
        %v1781 = vmax.f32 %v1749, 0.0
        %v1782 = vmax.f32 %v1750, 0.0
        %v1783 = vmax.f32 %v1751, 0.0
        %v1784 = vmax.f32 %v1752, 0.0
        %v1785 = vmax.f32 %v1753, 0.0
        %v1786 = vmax.f32 %v1754, 0.0
        %v1787 = vmax.f32 %v1755, 0.0
        %v1788 = vmax.f32 %v1756, 0.0
        %v1789 = vmax.f32 %v1757, 0.0
        %v1790 = vmax.f32 %v1758, 0.0
        %v1791 = vmax.f32 %v1759, 0.0
        %v1792 = vmax.f32 %v1760, 0.0
        %v1793 = vmax.f32 %v1761, 0.0
        %v1794 = vpack.c.bf16 %v1763, %v1762
        %v1795 = vpack.c.bf16 %v1765, %v1764
        %v1796 = vpack.c.bf16 %v1767, %v1766
        %v1797 = vpack.c.bf16 %v1769, %v1768
        %v1798 = vpack.c.bf16 %v1771, %v1770
        %v1799 = vpack.c.bf16 %v1773, %v1772
        %v1800 = vpack.c.bf16 %v1775, %v1774
        %v1801 = vpack.c.bf16 %v1777, %v1776
        %v1802 = vpack.c.bf16 %v1779, %v1778
        %v1803 = vpack.c.bf16 %v1781, %v1780
        %v1804 = vpack.c.bf16 %v1783, %v1782
        %v1805 = vpack.c.bf16 %v1785, %v1784
        %v1806 = vpack.c.bf16 %v1787, %v1786
        %v1807 = vpack.c.bf16 %v1789, %v1788
        %v1808 = vpack.c.bf16 %v1791, %v1790
        %v1809 = vpack.c.bf16 %v1793, %v1792
        %v1826 = vunpack.c.l.b16 %v1794
        %v1827 = vunpack.c.h.b16 %v1794
        %v1828 = vunpack.c.l.b16 %v1795
        %v1829 = vunpack.c.h.b16 %v1795
        %v1830 = vunpack.c.l.b16 %v1796
        %v1831 = vunpack.c.h.b16 %v1796
        %v1832 = vunpack.c.l.b16 %v1797
        %v1833 = vunpack.c.h.b16 %v1797
        %v1834 = vunpack.c.l.b16 %v1798
        %v1835 = vunpack.c.h.b16 %v1798
        %v1836 = vunpack.c.l.b16 %v1799
        %v1837 = vunpack.c.h.b16 %v1799
        %v1838 = vunpack.c.l.b16 %v1800
        %v1839 = vunpack.c.h.b16 %v1800
        %v1840 = vunpack.c.l.b16 %v1801
        %v1841 = vunpack.c.h.b16 %v1801
        %v1842 = vunpack.c.l.b16 %v1802
        %v1843 = vunpack.c.h.b16 %v1802
        %v1844 = vunpack.c.l.b16 %v1803
        %v1845 = vunpack.c.h.b16 %v1803
        %v1846 = vunpack.c.l.b16 %v1804
        %v1847 = vunpack.c.h.b16 %v1804
        %v1848 = vunpack.c.l.b16 %v1805
        %v1849 = vunpack.c.h.b16 %v1805
        %v1850 = vunpack.c.l.b16 %v1806
        %v1851 = vunpack.c.h.b16 %v1806
        %v1852 = vunpack.c.l.b16 %v1807
        %v1853 = vunpack.c.h.b16 %v1807
        %v1854 = vunpack.c.l.b16 %v1808
        %v1855 = vunpack.c.h.b16 %v1808
        %v1856 = vunpack.c.l.b16 %v1809
        %v1857 = vunpack.c.h.b16 %v1809
        %v1858 = vpack.c.b16 %v1826, %v1826
        %v1859 = vpack.c.b16 %v1827, %v1827
        %v1860 = vpack.c.b16 %v1828, %v1828
        %v1861 = vpack.c.b16 %v1829, %v1829
        %v1862 = vpack.c.b16 %v1830, %v1830
        %v1863 = vpack.c.b16 %v1831, %v1831
        %v1864 = vpack.c.b16 %v1832, %v1832
        %v1865 = vpack.c.b16 %v1833, %v1833
        %v1866 = vpack.c.b16 %v1834, %v1834
        %v1867 = vpack.c.b16 %v1835, %v1835
        %v1868 = vpack.c.b16 %v1836, %v1836
        %v1869 = vpack.c.b16 %v1837, %v1837
        %v1870 = vpack.c.b16 %v1838, %v1838
        %v1871 = vpack.c.b16 %v1839, %v1839
        %v1872 = vpack.c.b16 %v1840, %v1840
        %v1873 = vpack.c.b16 %v1841, %v1841
        %v1874 = vpack.c.b16 %v1842, %v1842
        %v1875 = vpack.c.b16 %v1843, %v1843
        %v1876 = vpack.c.b16 %v1844, %v1844
        %v1877 = vpack.c.b16 %v1845, %v1845
        %v1878 = vpack.c.b16 %v1846, %v1846
        %v1879 = vpack.c.b16 %v1847, %v1847
        %v1880 = vpack.c.b16 %v1848, %v1848
        %v1881 = vpack.c.b16 %v1849, %v1849
        %v1882 = vpack.c.b16 %v1850, %v1850
        %v1883 = vpack.c.b16 %v1851, %v1851
        %v1884 = vpack.c.b16 %v1852, %v1852
        %v1885 = vpack.c.b16 %v1853, %v1853
        %v1886 = vpack.c.b16 %v1854, %v1854
        %v1887 = vpack.c.b16 %v1855, %v1855
        %v1888 = vpack.c.b16 %v1856, %v1856
        %v1889 = vpack.c.b16 %v1857, %v1857
        %vm1922 = vcmask 257024
        %1923 = vst.msk [vmem:[%s334] sm:$0xf] %vm1922, %v1858
        %1924 = vst.msk [vmem:[%s334 + $0x4] sm:$0xf] %vm1922, %v1859
        %1925 = vst.msk [vmem:[%s334 + $0x8] sm:$0xf] %vm1922, %v1860
        %1926 = vst.msk [vmem:[%s334 + $0xc] sm:$0xf] %vm1922, %v1861
        %1927 = vst.msk [vmem:[%s334 + $0x10] sm:$0xf] %vm1922, %v1862
        %1928 = vst.msk [vmem:[%s334 + $0x14] sm:$0xf] %vm1922, %v1863
        %1929 = vst.msk [vmem:[%s334 + $0x18] sm:$0xf] %vm1922, %v1864
        %1930 = vst.msk [vmem:[%s334 + $0x1c] sm:$0xf] %vm1922, %v1865
        %1931 = vst.msk [vmem:[%s334 + $0x20] sm:$0xf] %vm1922, %v1866
        %1932 = vst.msk [vmem:[%s334 + $0x24] sm:$0xf] %vm1922, %v1867
        %1933 = vst.msk [vmem:[%s334 + $0x28] sm:$0xf] %vm1922, %v1868
        %1934 = vst.msk [vmem:[%s334 + $0x2c] sm:$0xf] %vm1922, %v1869
        %1935 = vst.msk [vmem:[%s334 + $0x30] sm:$0xf] %vm1922, %v1870
        %1936 = vst.msk [vmem:[%s334 + $0x34] sm:$0xf] %vm1922, %v1871
        %1937 = vst.msk [vmem:[%s334 + $0x38] sm:$0xf] %vm1922, %v1872
        %1938 = vst.msk [vmem:[%s334 + $0x3c] sm:$0xf] %vm1922, %v1873
        %1939 = vst.msk [vmem:[%s334 + $0x40] sm:$0xf] %vm1922, %v1874
        %1940 = vst.msk [vmem:[%s334 + $0x44] sm:$0xf] %vm1922, %v1875
        %1941 = vst.msk [vmem:[%s334 + $0x48] sm:$0xf] %vm1922, %v1876
        %1942 = vst.msk [vmem:[%s334 + $0x4c] sm:$0xf] %vm1922, %v1877
        %1943 = vst.msk [vmem:[%s334 + $0x50] sm:$0xf] %vm1922, %v1878
        %1944 = vst.msk [vmem:[%s334 + $0x54] sm:$0xf] %vm1922, %v1879
        %1945 = vst.msk [vmem:[%s334 + $0x58] sm:$0xf] %vm1922, %v1880
        %1946 = vst.msk [vmem:[%s334 + $0x5c] sm:$0xf] %vm1922, %v1881
        %1947 = vst.msk [vmem:[%s334 + $0x60] sm:$0xf] %vm1922, %v1882
        %1948 = vst.msk [vmem:[%s334 + $0x64] sm:$0xf] %vm1922, %v1883
        %1949 = vst.msk [vmem:[%s334 + $0x68] sm:$0xf] %vm1922, %v1884
        %1950 = vst.msk [vmem:[%s334 + $0x6c] sm:$0xf] %vm1922, %v1885
        %1951 = vst.msk [vmem:[%s334 + $0x70] sm:$0xf] %vm1922, %v1886
        %1952 = vst.msk [vmem:[%s334 + $0x74] sm:$0xf] %vm1922, %v1887
        %1953 = vst.msk [vmem:[%s334 + $0x78] sm:$0xf] %vm1922, %v1888
        %1954 = vst.msk [vmem:[%s334 + $0x7c] sm:$0xf] %vm1922, %v1889
        %s1955 = sand.u32 %s183, 1
        %s1956 = scalar_lea.sflag [#allocation3], %s1955
        %s1957 = sand.u32 %s183, 1
        %s1958 = smul.addr %s1957, 128
        %s1959 = scalar_lea.vmem [#allocation2], %s1958
        // Predicated region
        $region41: #{tpu_custom_call.1} parent=39 // pred_check
          %p1960 = pneg %p193
        $region42: #{tpu_custom_call.1} parent=39 // pred_check_branch
          %1962 = sbr.rel (%p1960) target = $region44
        $region43: #{tpu_custom_call.1} parent=39 // pred_region
          %s1963 = smul.u32 8, %s24
          %s1965 = ssub.s32 2048, 2048
          %1966 = vsyncadd %s1956, %s1965
          %s1967 = smul.addr %s1963, 4
          %s1968 = smul.addr %s23, 128
          %s1969 = sadd.s32 %s1967, %s1968
          %s1970 = smul.addr %s1969, 64
          %s1971 = scalar_lea.hbm %s5, %s1970
          %s1972 = sshll.u32 %s1959, 4
          %s1973 = int_to_ptr.vmem [resolvable:$true] %s1972
          %1978 = dma.vmem_to_hbm [thread:$0]  %s1973, 2048, %s1971, %s1956, 64, 64, 4
        $region44: #{tpu_custom_call.1} parent=39 // pred_fallthru
          _
      $region40: #{tpu_custom_call.1} parent=5 // pred_fallthru
        _
      %p1979 = scmp.le.s32.totalorder 2, %s14
      // Predicated region
      $region45: #{tpu_custom_call.1} parent=5 // pred_check
        %p1980 = pneg %p1979
      $region46: #{tpu_custom_call.1} parent=5 // pred_check_branch
        %1982 = sbr.rel (%p1980) target = $region48
      $region47: #{tpu_custom_call.1} parent=5 // pred_region
        %s1983 = ssub.s32 %s14, 2
        // Predicated region
        $region49: #{tpu_custom_call.1} parent=47 // pred_check
          %p1984 = pneg %p199
        $region50: #{tpu_custom_call.1} parent=47 // pred_check_branch
          %1986 = sbr.rel (%p1984) target = $region52
        $region51: #{tpu_custom_call.1} parent=47 // pred_region
          %s1987 = sand.u32 %s184, 1
          %s1988 = scalar_lea.sflag [#allocation3], %s1987
          %s1989 = sand.u32 %s184, 1
          %s1990 = smul.addr %s1989, 128
          %s1991 = scalar_lea.vmem [#allocation2], %s1990
          %1992 = dma.done %s1988, 2048
        $region52: #{tpu_custom_call.1} parent=47 // pred_fallthru
          _
      $region48: #{tpu_custom_call.1} parent=5 // pred_fallthru
        _
    $region6: #{tpu_custom_call.1} parent=1 // loop_footer
      %s18 = sadd.s32 1, %s14
    $region7: #{tpu_custom_call.1} parent=1 // loop_footer_branch
      %13 = sbr.rel target = $region3
    $region8: #{tpu_custom_call.1} parent=1 // loop_exit
      _
    %1993 = vsyncpa [#allocation3], 1
    %s1994 = scalar_lea.sflag [#allocation3], 1
    %1995 = vsyncpa %s1994, 1

</llo_original>
